<compile_context>
chip_gen: v6e
topology: v6e:2x2x1
jax: 0.10.0
libtpu: 0.0.40
codegen_flags: <defaults>
</compile_context>

<pallas_src>
import functools

import jax
import jax.numpy as jnp
from jax import lax
from jax.experimental import pallas as pl
from jax.experimental.pallas import tpu as pltpu


# ---------------------------------------------------------------------------
# Pallas kernels
# ---------------------------------------------------------------------------

def _conv_gemm_kernel(lhs_ref, rhs_ref, b_ref, o_ref):
    """One row-tile of: out = patches @ weight + bias."""
    acc = jnp.dot(lhs_ref[...], rhs_ref[...], preferred_element_type=jnp.float32)
    o_ref[...] = (acc + b_ref[...]).astype(o_ref.dtype)


def _gdn_kernel(x_ref, w_ref, b_ref, o_ref):
    """Fused GDN on a row-tile of channels-last pixels.

    norm = (x * x) @ gamma^T + beta ;  y = x * rsqrt(norm)
    (gamma is passed pre-transposed to (Cin, Cout)).
    """
    x = x_ref[...].astype(jnp.float32)
    z = x * x
    norm = jnp.dot(z, w_ref[...], preferred_element_type=jnp.float32) + b_ref[...]
    o_ref[...] = (x * lax.rsqrt(norm)).astype(o_ref.dtype)


# ---------------------------------------------------------------------------
# Pallas wrappers
# ---------------------------------------------------------------------------

def _row_tile(m, target=2048):
    """Largest row tile <= target that divides m and is a multiple of 8."""
    if m <= target or m % 8 != 0:
        return m  # full-extent block (always legal)
    t = (target // 8) * 8
    while m % t != 0:
        t -= 8
    return max(t, 8)


def _matmul_bias(lhs, rhs, bias):
    """(M, K) @ (K, N) + (N,) with a row-tiled, pipelined Pallas GEMM."""
    m, k = lhs.shape
    n = rhs.shape[1]
    tm = _row_tile(m)
    grid = (m // tm,)
    return pl.pallas_call(
        _conv_gemm_kernel,
        out_shape=jax.ShapeDtypeStruct((m, n), lhs.dtype),
        grid_spec=pltpu.PrefetchScalarGridSpec(
            num_scalar_prefetch=0,
            grid=grid,
            in_specs=[
                pl.BlockSpec((tm, k), lambda i: (i, 0)),   # patches row tile
                pl.BlockSpec((k, n), lambda i: (0, 0)),    # full weight (resident)
                pl.BlockSpec((1, n), lambda i: (0, 0)),    # bias
            ],
            out_specs=pl.BlockSpec((tm, n), lambda i: (i, 0)),
        ),
        compiler_params=pltpu.CompilerParams(
            dimension_semantics=("parallel",)),
    )(lhs, rhs, bias.reshape(1, n))


def _gdn_apply_rows(x_rows, gamma_t, beta):
    """x_rows: (P, C) channels-last pixels; gamma_t: (Cin, Cout); beta: (C,)."""
    p, c = x_rows.shape
    tp = _row_tile(p)
    grid = (p // tp,)
    return pl.pallas_call(
        _gdn_kernel,
        out_shape=jax.ShapeDtypeStruct((p, c), x_rows.dtype),
        grid_spec=pltpu.PrefetchScalarGridSpec(
            num_scalar_prefetch=0,
            grid=grid,
            in_specs=[
                pl.BlockSpec((tp, c), lambda i: (i, 0)),
                pl.BlockSpec((c, c), lambda i: (0, 0)),
                pl.BlockSpec((1, c), lambda i: (0, 0)),
            ],
            out_specs=pl.BlockSpec((tp, c), lambda i: (i, 0)),
        ),
        compiler_params=pltpu.CompilerParams(
            dimension_semantics=("parallel",)),
    )(x_rows, gamma_t, beta.reshape(1, c))


# ---------------------------------------------------------------------------
# Conv (im2col in the wrapper, GEMM in Pallas)
# ---------------------------------------------------------------------------

def _im2col_nhwc(x_nhwc, ksize=5, stride=2, pad=2):
    n, h, w, c = x_nhwc.shape
    ho = (h + 2 * pad - ksize) // stride + 1
    wo = (w + 2 * pad - ksize) // stride + 1
    xp = jnp.pad(x_nhwc, ((0, 0), (pad, pad), (pad, pad), (0, 0)))
    cols = []
    for kh in range(ksize):
        for kw in range(ksize):
            cols.append(xp[:, kh::stride, kw::stride, :][:, :ho, :wo, :])
    patches = jnp.stack(cols, axis=3)                     # (N, Ho, Wo, 25, C)
    return patches.reshape(n * ho * wo, ksize * ksize * c), ho, wo


def _conv5x5_s2(x_nhwc, w_oihw, b):
    """5x5 / stride-2 / pad-2 convolution (PyTorch OIHW weights), NHWC in/out."""
    cout, cin, kh, kw = w_oihw.shape
    n = x_nhwc.shape[0]
    patches, ho, wo = _im2col_nhwc(x_nhwc, ksize=kh)
    # (Cout, Cin, 5, 5) -> (5, 5, Cin, Cout) -> (25*Cin, Cout): matches patch K order.
    w_mat = jnp.transpose(w_oihw, (2, 3, 1, 0)).reshape(kh * kw * cin, cout)
    # Pad K to a multiple of 128 (zeros contribute nothing) for aligned MXU tiles.
    k = w_mat.shape[0]
    kpad = (-k) % 128
    if kpad:
        patches = jnp.pad(patches, ((0, 0), (0, kpad)))
        w_mat = jnp.pad(w_mat, ((0, kpad), (0, 0)))
    out = _matmul_bias(patches, w_mat, b)                 # (N*Ho*Wo, Cout)
    return out.reshape(n, ho, wo, cout)


# ---------------------------------------------------------------------------
# GDN / LowerBoundParameter parameterization (plain JAX, tiny per-channel math)
# ---------------------------------------------------------------------------

def _lower_bound_param_init(init_value, minimum, epsilon):
    eps2 = epsilon ** 2
    raw = jnp.sqrt(jnp.maximum(init_value + eps2, eps2)).astype(jnp.float32)
    min_buf = jnp.sqrt(jnp.asarray(minimum + eps2, dtype=jnp.float32))
    return raw, min_buf, float(eps2)


def _lower_bound_param_forward(raw, min_buf, eps2):
    return jnp.maximum(raw, min_buf) ** 2 - eps2


def init_encoder_params(key, channels):
    def conv_init(k, cout, cin, ksize=5):
        fan_in = cin * ksize * ksize
        bound = (1.0 / fan_in) ** 0.5
        kw_, kb_ = jax.random.split(k)
        w = jax.random.uniform(kw_, (cout, cin, ksize, ksize), jnp.float32, -bound, bound)
        b = jax.random.uniform(kb_, (cout,), jnp.float32, -bound, bound)
        return w, b

    k1, k2, k3, k4 = jax.random.split(key, 4)
    params = {
        "conv1": conv_init(k1, channels, 3),
        "conv2": conv_init(k2, channels, channels),
        "conv3": conv_init(k3, channels, channels),
        "conv4": conv_init(k4, channels, channels),
    }
    # Single GDN instance shared by all three activations (as in the torch module).
    eps = 2.0 ** (-18)
    b_raw, b_min, eps2 = _lower_bound_param_init(
        jnp.ones((channels,), jnp.float32), 1e-6, eps)
    w_raw, w_min, _ = _lower_bound_param_init(
        0.1 * jnp.eye(channels, dtype=jnp.float32), 0.0, eps)
    params["gdn"] = {"b_raw": b_raw, "b_min": b_min,
                     "w_raw": w_raw, "w_min": w_min, "eps2": eps2}
    return params


# ---------------------------------------------------------------------------
# Encoder forward (Pallas pipeline) + pure-JAX reference
# ---------------------------------------------------------------------------

def encoder_forward(x_nchw, params):
    # Channels-last internally so channels land on TPU lanes.
    x = jnp.transpose(x_nchw, (0, 2, 3, 1))

    gdn = params["gdn"]
    beta = _lower_bound_param_forward(gdn["b_raw"], gdn["b_min"], gdn["eps2"])   # (C,)
    gamma = _lower_bound_param_forward(gdn["w_raw"], gdn["w_min"], gdn["eps2"])  # (Cout, Cin)
    gamma_t = gamma.T                                                            # (Cin, Cout)

    def gdn_nhwc(h):
        n, ho, wo, c = h.shape
        y = _gdn_apply_rows(h.reshape(n * ho * wo, c), gamma_t, beta)
        return y.reshape(n, ho, wo, c)

    h = _conv5x5_s2(x, *params["conv1"])
    h = gdn_nhwc(h)
    h = _conv5x5_s2(h, *params["conv2"])
    h = gdn_nhwc(h)
    h = _conv5x5_s2(h, *params["conv3"])
    h = gdn_nhwc(h)
    h = _conv5x5_s2(h, *params["conv4"])
    return jnp.transpose(h, (0, 3, 1, 2))


def encoder_reference(x_nchw, params):
    """Plain-JAX reference of the same forward pass (for correctness check)."""
    def conv_ref(x, w, b):
        y = lax.conv_general_dilated(
            x, w, window_strides=(2, 2), padding=((2, 2), (2, 2)),
            dimension_numbers=("NCHW", "OIHW", "NCHW"))
        return y + b.reshape(1, -1, 1, 1)

    gdn = params["gdn"]
    beta = _lower_bound_param_forward(gdn["b_raw"], gdn["b_min"], gdn["eps2"])
    gamma = _lower_bound_param_forward(gdn["w_raw"], gdn["w_min"], gdn["eps2"])

    def gdn_ref(x):
        norm = jnp.einsum("nchw,dc->ndhw", x * x, gamma) + beta.reshape(1, -1, 1, 1)
        return x * lax.rsqrt(norm)

    h = conv_ref(x_nchw, *params["conv1"]); h = gdn_ref(h)
    h = conv_ref(h, *params["conv2"]);      h = gdn_ref(h)
    h = conv_ref(h, *params["conv3"]);      h = gdn_ref(h)
    h = conv_ref(h, *params["conv4"])
    return h


if __name__ == "__main__":
    key = jax.random.PRNGKey(0)
    k_x, k_p = jax.random.split(key)

    channels = 8
    x = jax.random.normal(k_x, (2, 3, 32, 32), dtype=jnp.float32)  # NCHW, RGB input
    params = init_encoder_params(k_p, channels)

    out = jax.jit(encoder_forward)(x, params)
    out = jax.block_until_ready(out)

    ref = encoder_reference(x, params)
    assert out.shape == ref.shape == (2, channels, 2, 2), (out.shape, ref.shape)
    max_err = float(jnp.max(jnp.abs(out - ref)))
    assert max_err < 1e-2, f"max abs error too large: {max_err}"

    print("KERNEL_OK")
</pallas_src>

<mosaic_0001>
module attributes {stable_mosaic.version = 11 : i64} {
  func.func @_conv_gemm_kernel(%arg0: i32, %arg1: memref<512x128xf32, #tpu.memory_space<vmem>>, %arg2: memref<128x8xf32, #tpu.memory_space<vmem>>, %arg3: memref<1x8xf32, #tpu.memory_space<vmem>>, %arg4: memref<512x8xf32, #tpu.memory_space<vmem>>) attributes {dimension_semantics = [#tpu.dimension_semantics<parallel>], iteration_bounds = array<i64: 1>, scalar_prefetch = 0 : i64, scratch_operands = 0 : i64, tpu.core_type = #tpu.core_type<tc>, window_params = [{transform_indices = @transform_0, window_bounds = array<i64: 512, 128>}, {pipeline_mode = #tpu.pipeline_mode<synchronous>, transform_indices = @transform_1, window_bounds = array<i64: 128, 8>}, {pipeline_mode = #tpu.pipeline_mode<synchronous>, transform_indices = @transform_2, window_bounds = array<i64: 1, 8>}, {transform_indices = @transform_3, window_bounds = array<i64: 512, 8>}]} {
    %c0 = arith.constant 0 : index
    %c0_0 = arith.constant 0 : index
    %0 = vector.load %arg1[%c0, %c0_0] : memref<512x128xf32, #tpu.memory_space<vmem>>, vector<512x128xf32>
    %c0_1 = arith.constant 0 : index
    %c0_2 = arith.constant 0 : index
    %1 = vector.load %arg2[%c0_1, %c0_2] : memref<128x8xf32, #tpu.memory_space<vmem>>, vector<128x8xf32>
    %cst = arith.constant dense<0.000000e+00> : vector<512x8xf32>
    %2 = tpu.matmul %0, %1, %cst {dimension_numbers = #tpu.dot_dimension_numbers<[1], [0], [0], [1], [0, 0, 1, 1], [], []>} : vector<512x128xf32>, vector<128x8xf32>, vector<512x8xf32> -> vector<512x8xf32>
    %c0_3 = arith.constant 0 : index
    %c0_4 = arith.constant 0 : index
    %3 = vector.load %arg3[%c0_3, %c0_4] : memref<1x8xf32, #tpu.memory_space<vmem>>, vector<1x8xf32>
    %4 = vector.broadcast %3 : vector<1x8xf32> to vector<512x8xf32>
    %5 = arith.addf %2, %4 : vector<512x8xf32>
    %c0_5 = arith.constant 0 : index
    %c0_6 = arith.constant 0 : index
    %6 = vector.load %arg4[%c0_5, %c0_6] : memref<512x8xf32, #tpu.memory_space<vmem>>, vector<512x8xf32>
    tpu.vector_store %arg4[%c0_5, %c0_6], %5 {strides = array<i32>} : memref<512x8xf32, #tpu.memory_space<vmem>>, vector<512x8xf32>,
    return
  }
  func.func @transform_0(%arg0: i32) -> (i32, i32) {
    %c0_i32 = arith.constant 0 : i32
    %c0_i32_0 = arith.constant 0 : i32
    return %arg0, %c0_i32 : i32, i32
  }
  func.func @transform_1(%arg0: i32) -> (i32, i32) {
    %c0_i32 = arith.constant 0 : i32
    %c0_i32_0 = arith.constant 0 : i32
    %c0_i32_1 = arith.constant 0 : i32
    return %c0_i32, %c0_i32_0 : i32, i32
  }
  func.func @transform_2(%arg0: i32) -> (i32, i32) {
    %c0_i32 = arith.constant 0 : i32
    %c0_i32_0 = arith.constant 0 : i32
    %c0_i32_1 = arith.constant 0 : i32
    return %c0_i32, %c0_i32_0 : i32, i32
  }
  func.func @transform_3(%arg0: i32) -> (i32, i32) {
    %c0_i32 = arith.constant 0 : i32
    %c0_i32_0 = arith.constant 0 : i32
    return %arg0, %c0_i32 : i32, i32
  }
}

module attributes {stable_mosaic.version = 11 : i64} {
  func.func @_gdn_kernel(%arg0: i32, %arg1: memref<512x8xf32, #tpu.memory_space<vmem>>, %arg2: memref<8x8xf32, #tpu.memory_space<vmem>>, %arg3: memref<1x8xf32, #tpu.memory_space<vmem>>, %arg4: memref<512x8xf32, #tpu.memory_space<vmem>>) attributes {dimension_semantics = [#tpu.dimension_semantics<parallel>], iteration_bounds = array<i64: 1>, scalar_prefetch = 0 : i64, scratch_operands = 0 : i64, tpu.core_type = #tpu.core_type<tc>, window_params = [{transform_indices = @transform_0, window_bounds = array<i64: 512, 8>}, {pipeline_mode = #tpu.pipeline_mode<synchronous>, transform_indices = @transform_1, window_bounds = array<i64: 8, 8>}, {pipeline_mode = #tpu.pipeline_mode<synchronous>, transform_indices = @transform_2, window_bounds = array<i64: 1, 8>}, {transform_indices = @transform_3, window_bounds = array<i64: 512, 8>}]} {
    %c0 = arith.constant 0 : index
    %c0_0 = arith.constant 0 : index
    %0 = vector.load %arg1[%c0, %c0_0] : memref<512x8xf32, #tpu.memory_space<vmem>>, vector<512x8xf32>
    %1 = arith.mulf %0, %0 : vector<512x8xf32>
    %c0_1 = arith.constant 0 : index
    %c0_2 = arith.constant 0 : index
    %2 = vector.load %arg2[%c0_1, %c0_2] : memref<8x8xf32, #tpu.memory_space<vmem>>, vector<8x8xf32>
    %cst = arith.constant dense<0.000000e+00> : vector<512x8xf32>
    %3 = tpu.matmul %1, %2, %cst {dimension_numbers = #tpu.dot_dimension_numbers<[1], [0], [0], [1], [0, 0, 1, 1], [], []>} : vector<512x8xf32>, vector<8x8xf32>, vector<512x8xf32> -> vector<512x8xf32>
    %c0_3 = arith.constant 0 : index
    %c0_4 = arith.constant 0 : index
    %4 = vector.load %arg3[%c0_3, %c0_4] : memref<1x8xf32, #tpu.memory_space<vmem>>, vector<1x8xf32>
    %5 = vector.broadcast %4 : vector<1x8xf32> to vector<512x8xf32>
    %6 = arith.addf %3, %5 : vector<512x8xf32>
    %7 = math.rsqrt %6 : vector<512x8xf32>
    %8 = arith.mulf %0, %7 : vector<512x8xf32>
    %c0_5 = arith.constant 0 : index
    %c0_6 = arith.constant 0 : index
    %9 = vector.load %arg4[%c0_5, %c0_6] : memref<512x8xf32, #tpu.memory_space<vmem>>, vector<512x8xf32>
    tpu.vector_store %arg4[%c0_5, %c0_6], %8 {strides = array<i32>} : memref<512x8xf32, #tpu.memory_space<vmem>>, vector<512x8xf32>,
    return
  }
  func.func @transform_0(%arg0: i32) -> (i32, i32) {
    %c0_i32 = arith.constant 0 : i32
    %c0_i32_0 = arith.constant 0 : i32
    return %arg0, %c0_i32 : i32, i32
  }
  func.func @transform_1(%arg0: i32) -> (i32, i32) {
    %c0_i32 = arith.constant 0 : i32
    %c0_i32_0 = arith.constant 0 : i32
    %c0_i32_1 = arith.constant 0 : i32
    return %c0_i32, %c0_i32_0 : i32, i32
  }
  func.func @transform_2(%arg0: i32) -> (i32, i32) {
    %c0_i32 = arith.constant 0 : i32
    %c0_i32_0 = arith.constant 0 : i32
    %c0_i32_1 = arith.constant 0 : i32
    return %c0_i32, %c0_i32_0 : i32, i32
  }
  func.func @transform_3(%arg0: i32) -> (i32, i32) {
    %c0_i32 = arith.constant 0 : i32
    %c0_i32_0 = arith.constant 0 : i32
    return %arg0, %c0_i32 : i32, i32
  }
}

module attributes {stable_mosaic.version = 11 : i64} {
  func.func @_conv_gemm_kernel(%arg0: i32, %arg1: memref<128x256xf32, #tpu.memory_space<vmem>>, %arg2: memref<256x8xf32, #tpu.memory_space<vmem>>, %arg3: memref<1x8xf32, #tpu.memory_space<vmem>>, %arg4: memref<128x8xf32, #tpu.memory_space<vmem>>) attributes {dimension_semantics = [#tpu.dimension_semantics<parallel>], iteration_bounds = array<i64: 1>, scalar_prefetch = 0 : i64, scratch_operands = 0 : i64, tpu.core_type = #tpu.core_type<tc>, window_params = [{transform_indices = @transform_0, window_bounds = array<i64: 128, 256>}, {pipeline_mode = #tpu.pipeline_mode<synchronous>, transform_indices = @transform_1, window_bounds = array<i64: 256, 8>}, {pipeline_mode = #tpu.pipeline_mode<synchronous>, transform_indices = @transform_2, window_bounds = array<i64: 1, 8>}, {transform_indices = @transform_3, window_bounds = array<i64: 128, 8>}]} {
    %c0 = arith.constant 0 : index
    %c0_0 = arith.constant 0 : index
    %0 = vector.load %arg1[%c0, %c0_0] : memref<128x256xf32, #tpu.memory_space<vmem>>, vector<128x256xf32>
    %c0_1 = arith.constant 0 : index
    %c0_2 = arith.constant 0 : index
    %1 = vector.load %arg2[%c0_1, %c0_2] : memref<256x8xf32, #tpu.memory_space<vmem>>, vector<256x8xf32>
    %cst = arith.constant dense<0.000000e+00> : vector<128x8xf32>
    %2 = tpu.matmul %0, %1, %cst {dimension_numbers = #tpu.dot_dimension_numbers<[1], [0], [0], [1], [0, 0, 1, 1], [], []>} : vector<128x256xf32>, vector<256x8xf32>, vector<128x8xf32> -> vector<128x8xf32>
    %c0_3 = arith.constant 0 : index
    %c0_4 = arith.constant 0 : index
    %3 = vector.load %arg3[%c0_3, %c0_4] : memref<1x8xf32, #tpu.memory_space<vmem>>, vector<1x8xf32>
    %4 = vector.broadcast %3 : vector<1x8xf32> to vector<128x8xf32>
    %5 = arith.addf %2, %4 : vector<128x8xf32>
    %c0_5 = arith.constant 0 : index
    %c0_6 = arith.constant 0 : index
    %6 = vector.load %arg4[%c0_5, %c0_6] : memref<128x8xf32, #tpu.memory_space<vmem>>, vector<128x8xf32>
    tpu.vector_store %arg4[%c0_5, %c0_6], %5 {strides = array<i32>} : memref<128x8xf32, #tpu.memory_space<vmem>>, vector<128x8xf32>,
    return
  }
  func.func @transform_0(%arg0: i32) -> (i32, i32) {
    %c0_i32 = arith.constant 0 : i32
    %c0_i32_0 = arith.constant 0 : i32
    return %arg0, %c0_i32 : i32, i32
  }
  func.func @transform_1(%arg0: i32) -> (i32, i32) {
    %c0_i32 = arith.constant 0 : i32
    %c0_i32_0 = arith.constant 0 : i32
    %c0_i32_1 = arith.constant 0 : i32
    return %c0_i32, %c0_i32_0 : i32, i32
  }
  func.func @transform_2(%arg0: i32) -> (i32, i32) {
    %c0_i32 = arith.constant 0 : i32
    %c0_i32_0 = arith.constant 0 : i32
    %c0_i32_1 = arith.constant 0 : i32
    return %c0_i32, %c0_i32_0 : i32, i32
  }
  func.func @transform_3(%arg0: i32) -> (i32, i32) {
    %c0_i32 = arith.constant 0 : i32
    %c0_i32_0 = arith.constant 0 : i32
    return %arg0, %c0_i32 : i32, i32
  }
}

module attributes {stable_mosaic.version = 11 : i64} {
  func.func @_gdn_kernel(%arg0: i32, %arg1: memref<128x8xf32, #tpu.memory_space<vmem>>, %arg2: memref<8x8xf32, #tpu.memory_space<vmem>>, %arg3: memref<1x8xf32, #tpu.memory_space<vmem>>, %arg4: memref<128x8xf32, #tpu.memory_space<vmem>>) attributes {dimension_semantics = [#tpu.dimension_semantics<parallel>], iteration_bounds = array<i64: 1>, scalar_prefetch = 0 : i64, scratch_operands = 0 : i64, tpu.core_type = #tpu.core_type<tc>, window_params = [{transform_indices = @transform_0, window_bounds = array<i64: 128, 8>}, {pipeline_mode = #tpu.pipeline_mode<synchronous>, transform_indices = @transform_1, window_bounds = array<i64: 8, 8>}, {pipeline_mode = #tpu.pipeline_mode<synchronous>, transform_indices = @transform_2, window_bounds = array<i64: 1, 8>}, {transform_indices = @transform_3, window_bounds = array<i64: 128, 8>}]} {
    %c0 = arith.constant 0 : index
    %c0_0 = arith.constant 0 : index
    %0 = vector.load %arg1[%c0, %c0_0] : memref<128x8xf32, #tpu.memory_space<vmem>>, vector<128x8xf32>
    %1 = arith.mulf %0, %0 : vector<128x8xf32>
    %c0_1 = arith.constant 0 : index
    %c0_2 = arith.constant 0 : index
    %2 = vector.load %arg2[%c0_1, %c0_2] : memref<8x8xf32, #tpu.memory_space<vmem>>, vector<8x8xf32>
    %cst = arith.constant dense<0.000000e+00> : vector<128x8xf32>
    %3 = tpu.matmul %1, %2, %cst {dimension_numbers = #tpu.dot_dimension_numbers<[1], [0], [0], [1], [0, 0, 1, 1], [], []>} : vector<128x8xf32>, vector<8x8xf32>, vector<128x8xf32> -> vector<128x8xf32>
    %c0_3 = arith.constant 0 : index
    %c0_4 = arith.constant 0 : index
    %4 = vector.load %arg3[%c0_3, %c0_4] : memref<1x8xf32, #tpu.memory_space<vmem>>, vector<1x8xf32>
    %5 = vector.broadcast %4 : vector<1x8xf32> to vector<128x8xf32>
    %6 = arith.addf %3, %5 : vector<128x8xf32>
    %7 = math.rsqrt %6 : vector<128x8xf32>
    %8 = arith.mulf %0, %7 : vector<128x8xf32>
    %c0_5 = arith.constant 0 : index
    %c0_6 = arith.constant 0 : index
    %9 = vector.load %arg4[%c0_5, %c0_6] : memref<128x8xf32, #tpu.memory_space<vmem>>, vector<128x8xf32>
    tpu.vector_store %arg4[%c0_5, %c0_6], %8 {strides = array<i32>} : memref<128x8xf32, #tpu.memory_space<vmem>>, vector<128x8xf32>,
    return
  }
  func.func @transform_0(%arg0: i32) -> (i32, i32) {
    %c0_i32 = arith.constant 0 : i32
    %c0_i32_0 = arith.constant 0 : i32
    return %arg0, %c0_i32 : i32, i32
  }
  func.func @transform_1(%arg0: i32) -> (i32, i32) {
    %c0_i32 = arith.constant 0 : i32
    %c0_i32_0 = arith.constant 0 : i32
    %c0_i32_1 = arith.constant 0 : i32
    return %c0_i32, %c0_i32_0 : i32, i32
  }
  func.func @transform_2(%arg0: i32) -> (i32, i32) {
    %c0_i32 = arith.constant 0 : i32
    %c0_i32_0 = arith.constant 0 : i32
    %c0_i32_1 = arith.constant 0 : i32
    return %c0_i32, %c0_i32_0 : i32, i32
  }
  func.func @transform_3(%arg0: i32) -> (i32, i32) {
    %c0_i32 = arith.constant 0 : i32
    %c0_i32_0 = arith.constant 0 : i32
    return %arg0, %c0_i32 : i32, i32
  }
}

module attributes {stable_mosaic.version = 11 : i64} {
  func.func @_conv_gemm_kernel(%arg0: i32, %arg1: memref<32x256xf32, #tpu.memory_space<vmem>>, %arg2: memref<256x8xf32, #tpu.memory_space<vmem>>, %arg3: memref<1x8xf32, #tpu.memory_space<vmem>>, %arg4: memref<32x8xf32, #tpu.memory_space<vmem>>) attributes {dimension_semantics = [#tpu.dimension_semantics<parallel>], iteration_bounds = array<i64: 1>, scalar_prefetch = 0 : i64, scratch_operands = 0 : i64, tpu.core_type = #tpu.core_type<tc>, window_params = [{transform_indices = @transform_0, window_bounds = array<i64: 32, 256>}, {pipeline_mode = #tpu.pipeline_mode<synchronous>, transform_indices = @transform_1, window_bounds = array<i64: 256, 8>}, {pipeline_mode = #tpu.pipeline_mode<synchronous>, transform_indices = @transform_2, window_bounds = array<i64: 1, 8>}, {transform_indices = @transform_3, window_bounds = array<i64: 32, 8>}]} {
    %c0 = arith.constant 0 : index
    %c0_0 = arith.constant 0 : index
    %0 = vector.load %arg1[%c0, %c0_0] : memref<32x256xf32, #tpu.memory_space<vmem>>, vector<32x256xf32>
    %c0_1 = arith.constant 0 : index
    %c0_2 = arith.constant 0 : index
    %1 = vector.load %arg2[%c0_1, %c0_2] : memref<256x8xf32, #tpu.memory_space<vmem>>, vector<256x8xf32>
    %cst = arith.constant dense<0.000000e+00> : vector<32x8xf32>
    %2 = tpu.matmul %0, %1, %cst {dimension_numbers = #tpu.dot_dimension_numbers<[1], [0], [0], [1], [0, 0, 1, 1], [], []>} : vector<32x256xf32>, vector<256x8xf32>, vector<32x8xf32> -> vector<32x8xf32>
    %c0_3 = arith.constant 0 : index
    %c0_4 = arith.constant 0 : index
    %3 = vector.load %arg3[%c0_3, %c0_4] : memref<1x8xf32, #tpu.memory_space<vmem>>, vector<1x8xf32>
    %4 = vector.broadcast %3 : vector<1x8xf32> to vector<32x8xf32>
    %5 = arith.addf %2, %4 : vector<32x8xf32>
    %c0_5 = arith.constant 0 : index
    %c0_6 = arith.constant 0 : index
    %6 = vector.load %arg4[%c0_5, %c0_6] : memref<32x8xf32, #tpu.memory_space<vmem>>, vector<32x8xf32>
    tpu.vector_store %arg4[%c0_5, %c0_6], %5 {strides = array<i32>} : memref<32x8xf32, #tpu.memory_space<vmem>>, vector<32x8xf32>,
    return
  }
  func.func @transform_0(%arg0: i32) -> (i32, i32) {
    %c0_i32 = arith.constant 0 : i32
    %c0_i32_0 = arith.constant 0 : i32
    return %arg0, %c0_i32 : i32, i32
  }
  func.func @transform_1(%arg0: i32) -> (i32, i32) {
    %c0_i32 = arith.constant 0 : i32
    %c0_i32_0 = arith.constant 0 : i32
    %c0_i32_1 = arith.constant 0 : i32
    return %c0_i32, %c0_i32_0 : i32, i32
  }
  func.func @transform_2(%arg0: i32) -> (i32, i32) {
    %c0_i32 = arith.constant 0 : i32
    %c0_i32_0 = arith.constant 0 : i32
    %c0_i32_1 = arith.constant 0 : i32
    return %c0_i32, %c0_i32_0 : i32, i32
  }
  func.func @transform_3(%arg0: i32) -> (i32, i32) {
    %c0_i32 = arith.constant 0 : i32
    %c0_i32_0 = arith.constant 0 : i32
    return %arg0, %c0_i32 : i32, i32
  }
}

module attributes {stable_mosaic.version = 11 : i64} {
  func.func @_gdn_kernel(%arg0: i32, %arg1: memref<32x8xf32, #tpu.memory_space<vmem>>, %arg2: memref<8x8xf32, #tpu.memory_space<vmem>>, %arg3: memref<1x8xf32, #tpu.memory_space<vmem>>, %arg4: memref<32x8xf32, #tpu.memory_space<vmem>>) attributes {dimension_semantics = [#tpu.dimension_semantics<parallel>], iteration_bounds = array<i64: 1>, scalar_prefetch = 0 : i64, scratch_operands = 0 : i64, tpu.core_type = #tpu.core_type<tc>, window_params = [{transform_indices = @transform_0, window_bounds = array<i64: 32, 8>}, {pipeline_mode = #tpu.pipeline_mode<synchronous>, transform_indices = @transform_1, window_bounds = array<i64: 8, 8>}, {pipeline_mode = #tpu.pipeline_mode<synchronous>, transform_indices = @transform_2, window_bounds = array<i64: 1, 8>}, {transform_indices = @transform_3, window_bounds = array<i64: 32, 8>}]} {
    %c0 = arith.constant 0 : index
    %c0_0 = arith.constant 0 : index
    %0 = vector.load %arg1[%c0, %c0_0] : memref<32x8xf32, #tpu.memory_space<vmem>>, vector<32x8xf32>
    %1 = arith.mulf %0, %0 : vector<32x8xf32>
    %c0_1 = arith.constant 0 : index
    %c0_2 = arith.constant 0 : index
    %2 = vector.load %arg2[%c0_1, %c0_2] : memref<8x8xf32, #tpu.memory_space<vmem>>, vector<8x8xf32>
    %cst = arith.constant dense<0.000000e+00> : vector<32x8xf32>
    %3 = tpu.matmul %1, %2, %cst {dimension_numbers = #tpu.dot_dimension_numbers<[1], [0], [0], [1], [0, 0, 1, 1], [], []>} : vector<32x8xf32>, vector<8x8xf32>, vector<32x8xf32> -> vector<32x8xf32>
    %c0_3 = arith.constant 0 : index
    %c0_4 = arith.constant 0 : index
    %4 = vector.load %arg3[%c0_3, %c0_4] : memref<1x8xf32, #tpu.memory_space<vmem>>, vector<1x8xf32>
    %5 = vector.broadcast %4 : vector<1x8xf32> to vector<32x8xf32>
    %6 = arith.addf %3, %5 : vector<32x8xf32>
    %7 = math.rsqrt %6 : vector<32x8xf32>
    %8 = arith.mulf %0, %7 : vector<32x8xf32>
    %c0_5 = arith.constant 0 : index
    %c0_6 = arith.constant 0 : index
    %9 = vector.load %arg4[%c0_5, %c0_6] : memref<32x8xf32, #tpu.memory_space<vmem>>, vector<32x8xf32>
    tpu.vector_store %arg4[%c0_5, %c0_6], %8 {strides = array<i32>} : memref<32x8xf32, #tpu.memory_space<vmem>>, vector<32x8xf32>,
    return
  }
  func.func @transform_0(%arg0: i32) -> (i32, i32) {
    %c0_i32 = arith.constant 0 : i32
    %c0_i32_0 = arith.constant 0 : i32
    return %arg0, %c0_i32 : i32, i32
  }
  func.func @transform_1(%arg0: i32) -> (i32, i32) {
    %c0_i32 = arith.constant 0 : i32
    %c0_i32_0 = arith.constant 0 : i32
    %c0_i32_1 = arith.constant 0 : i32
    return %c0_i32, %c0_i32_0 : i32, i32
  }
  func.func @transform_2(%arg0: i32) -> (i32, i32) {
    %c0_i32 = arith.constant 0 : i32
    %c0_i32_0 = arith.constant 0 : i32
    %c0_i32_1 = arith.constant 0 : i32
    return %c0_i32, %c0_i32_0 : i32, i32
  }
  func.func @transform_3(%arg0: i32) -> (i32, i32) {
    %c0_i32 = arith.constant 0 : i32
    %c0_i32_0 = arith.constant 0 : i32
    return %arg0, %c0_i32 : i32, i32
  }
}

module attributes {stable_mosaic.version = 11 : i64} {
  func.func @_conv_gemm_kernel(%arg0: i32, %arg1: memref<8x256xf32, #tpu.memory_space<vmem>>, %arg2: memref<256x8xf32, #tpu.memory_space<vmem>>, %arg3: memref<1x8xf32, #tpu.memory_space<vmem>>, %arg4: memref<8x8xf32, #tpu.memory_space<vmem>>) attributes {dimension_semantics = [#tpu.dimension_semantics<parallel>], iteration_bounds = array<i64: 1>, scalar_prefetch = 0 : i64, scratch_operands = 0 : i64, tpu.core_type = #tpu.core_type<tc>, window_params = [{transform_indices = @transform_0, window_bounds = array<i64: 8, 256>}, {pipeline_mode = #tpu.pipeline_mode<synchronous>, transform_indices = @transform_1, window_bounds = array<i64: 256, 8>}, {pipeline_mode = #tpu.pipeline_mode<synchronous>, transform_indices = @transform_2, window_bounds = array<i64: 1, 8>}, {transform_indices = @transform_3, window_bounds = array<i64: 8, 8>}]} {
    %c0 = arith.constant 0 : index
    %c0_0 = arith.constant 0 : index
    %0 = vector.load %arg1[%c0, %c0_0] : memref<8x256xf32, #tpu.memory_space<vmem>>, vector<8x256xf32>
    %c0_1 = arith.constant 0 : index
    %c0_2 = arith.constant 0 : index
    %1 = vector.load %arg2[%c0_1, %c0_2] : memref<256x8xf32, #tpu.memory_space<vmem>>, vector<256x8xf32>
    %cst = arith.constant dense<0.000000e+00> : vector<8x8xf32>
    %2 = tpu.matmul %0, %1, %cst {dimension_numbers = #tpu.dot_dimension_numbers<[1], [0], [0], [1], [0, 0, 1, 1], [], []>} : vector<8x256xf32>, vector<256x8xf32>, vector<8x8xf32> -> vector<8x8xf32>
    %c0_3 = arith.constant 0 : index
    %c0_4 = arith.constant 0 : index
    %3 = vector.load %arg3[%c0_3, %c0_4] : memref<1x8xf32, #tpu.memory_space<vmem>>, vector<1x8xf32>
    %4 = vector.broadcast %3 : vector<1x8xf32> to vector<8x8xf32>
    %5 = arith.addf %2, %4 : vector<8x8xf32>
    %c0_5 = arith.constant 0 : index
    %c0_6 = arith.constant 0 : index
    %6 = vector.load %arg4[%c0_5, %c0_6] : memref<8x8xf32, #tpu.memory_space<vmem>>, vector<8x8xf32>
    tpu.vector_store %arg4[%c0_5, %c0_6], %5 {strides = array<i32>} : memref<8x8xf32, #tpu.memory_space<vmem>>, vector<8x8xf32>,
    return
  }
  func.func @transform_0(%arg0: i32) -> (i32, i32) {
    %c0_i32 = arith.constant 0 : i32
    %c0_i32_0 = arith.constant 0 : i32
    return %arg0, %c0_i32 : i32, i32
  }
  func.func @transform_1(%arg0: i32) -> (i32, i32) {
    %c0_i32 = arith.constant 0 : i32
    %c0_i32_0 = arith.constant 0 : i32
    %c0_i32_1 = arith.constant 0 : i32
    return %c0_i32, %c0_i32_0 : i32, i32
  }
  func.func @transform_2(%arg0: i32) -> (i32, i32) {
    %c0_i32 = arith.constant 0 : i32
    %c0_i32_0 = arith.constant 0 : i32
    %c0_i32_1 = arith.constant 0 : i32
    return %c0_i32, %c0_i32_0 : i32, i32
  }
  func.func @transform_3(%arg0: i32) -> (i32, i32) {
    %c0_i32 = arith.constant 0 : i32
    %c0_i32_0 = arith.constant 0 : i32
    return %arg0, %c0_i32 : i32, i32
  }
}

</mosaic_0001>

<llo_original>
// kernel: encoder_forward.7
$region0: #{encoder_forward.7}
  #allocation0 [shape = 'u32[]', space=smem, size = 0x4, offset = 0x4, fixed_abs, tag = 'smem constant byte address 0x4 - core index']
  #allocation1 [shape = 'u32[144,128]{1,0:T(1,128)}', space=vmem, size = 0x12000, scoped, tag = 'internal scratch']
  %s0 = inlined_call_operand.vmem [shape: f32[512,128], index: 0, kind: input, shape index: {}]
  %s1 = inlined_call_operand.vmem [shape: f32[128,8], index: 1, kind: input, shape index: {}]
  %s2 = inlined_call_operand.vmem [shape: f32[1,8], index: 2, kind: input, shape index: {}]
  %s3 = inlined_call_operand.vmem [shape: f32[512,8], index: 3, kind: output, shape index: {}]
  %s4 = sld [smem:[#allocation0]]
  $region22: #{encoder_forward.7} parent=0
    _
  %s6 = ssub.s32 1, %s4
  %s7 = scalar_select 0, %s6, %s4
  // Predicated region
  $region2: #{encoder_forward.7} parent=0 // pred_check
    _
  $region3: #{encoder_forward.7} parent=0 // pred_check_branch
    %9 = sbr.rel (0) target = $region5
  $region4: #{encoder_forward.7} parent=0 // pred_region
    _
  $region5: #{encoder_forward.7} parent=0 // pred_fallthru
    _
  // Predicated region
  $region6: #{encoder_forward.7} parent=0 // pred_check
    _
  $region7: #{encoder_forward.7} parent=0 // pred_check_branch
    %11 = sbr.rel (0) target = $region9
  $region8: #{encoder_forward.7} parent=0 // pred_region
    _
  $region9: #{encoder_forward.7} parent=0 // pred_fallthru
    _
  // Predicated region
  $region10: #{encoder_forward.7} parent=0 // pred_check
    _
  $region11: #{encoder_forward.7} parent=0 // pred_check_branch
    %13 = sbr.rel (0) target = $region13
  $region12: #{encoder_forward.7} parent=0 // pred_region
    _
  $region13: #{encoder_forward.7} parent=0 // pred_fallthru
    _
  %v14 = vld [vmem:[%s0] sm:$0xff]
  %v15 = vld [vmem:[%s0 + $0x8] sm:$0xff]
  %v16 = vld [vmem:[%s0 + $0x10] sm:$0xff]
  %v17 = vld [vmem:[%s0 + $0x18] sm:$0xff]
  %v18 = vld [vmem:[%s0 + $0x20] sm:$0xff]
  %v19 = vld [vmem:[%s0 + $0x28] sm:$0xff]
  %v20 = vld [vmem:[%s0 + $0x30] sm:$0xff]
  %v21 = vld [vmem:[%s0 + $0x38] sm:$0xff]
  %v22 = vld [vmem:[%s0 + $0x40] sm:$0xff]
  %v23 = vld [vmem:[%s0 + $0x48] sm:$0xff]
  %v24 = vld [vmem:[%s0 + $0x50] sm:$0xff]
  %v25 = vld [vmem:[%s0 + $0x58] sm:$0xff]
  %v26 = vld [vmem:[%s0 + $0x60] sm:$0xff]
  %v27 = vld [vmem:[%s0 + $0x68] sm:$0xff]
  %v28 = vld [vmem:[%s0 + $0x70] sm:$0xff]
  %v29 = vld [vmem:[%s0 + $0x78] sm:$0xff]
  %v30 = vld [vmem:[%s0 + $0x80] sm:$0xff]
  %v31 = vld [vmem:[%s0 + $0x88] sm:$0xff]
  %v32 = vld [vmem:[%s0 + $0x90] sm:$0xff]
  %v33 = vld [vmem:[%s0 + $0x98] sm:$0xff]
  %v34 = vld [vmem:[%s0 + $0xa0] sm:$0xff]
  %v35 = vld [vmem:[%s0 + $0xa8] sm:$0xff]
  %v36 = vld [vmem:[%s0 + $0xb0] sm:$0xff]
  %v37 = vld [vmem:[%s0 + $0xb8] sm:$0xff]
  %v38 = vld [vmem:[%s0 + $0xc0] sm:$0xff]
  %v39 = vld [vmem:[%s0 + $0xc8] sm:$0xff]
  %v40 = vld [vmem:[%s0 + $0xd0] sm:$0xff]
  %v41 = vld [vmem:[%s0 + $0xd8] sm:$0xff]
  %v42 = vld [vmem:[%s0 + $0xe0] sm:$0xff]
  %v43 = vld [vmem:[%s0 + $0xe8] sm:$0xff]
  %v44 = vld [vmem:[%s0 + $0xf0] sm:$0xff]
  %v45 = vld [vmem:[%s0 + $0xf8] sm:$0xff]
  %v46 = vld [vmem:[%s0 + $0x100] sm:$0xff]
  %v47 = vld [vmem:[%s0 + $0x108] sm:$0xff]
  %v48 = vld [vmem:[%s0 + $0x110] sm:$0xff]
  %v49 = vld [vmem:[%s0 + $0x118] sm:$0xff]
  %v50 = vld [vmem:[%s0 + $0x120] sm:$0xff]
  %v51 = vld [vmem:[%s0 + $0x128] sm:$0xff]
  %v52 = vld [vmem:[%s0 + $0x130] sm:$0xff]
  %v53 = vld [vmem:[%s0 + $0x138] sm:$0xff]
  %v54 = vld [vmem:[%s0 + $0x140] sm:$0xff]
  %v55 = vld [vmem:[%s0 + $0x148] sm:$0xff]
  %v56 = vld [vmem:[%s0 + $0x150] sm:$0xff]
  %v57 = vld [vmem:[%s0 + $0x158] sm:$0xff]
  %v58 = vld [vmem:[%s0 + $0x160] sm:$0xff]
  %v59 = vld [vmem:[%s0 + $0x168] sm:$0xff]
  %v60 = vld [vmem:[%s0 + $0x170] sm:$0xff]
  %v61 = vld [vmem:[%s0 + $0x178] sm:$0xff]
  %v62 = vld [vmem:[%s0 + $0x180] sm:$0xff]
  %v63 = vld [vmem:[%s0 + $0x188] sm:$0xff]
  %v64 = vld [vmem:[%s0 + $0x190] sm:$0xff]
  %v65 = vld [vmem:[%s0 + $0x198] sm:$0xff]
  %v66 = vld [vmem:[%s0 + $0x1a0] sm:$0xff]
  %v67 = vld [vmem:[%s0 + $0x1a8] sm:$0xff]
  %v68 = vld [vmem:[%s0 + $0x1b0] sm:$0xff]
  %v69 = vld [vmem:[%s0 + $0x1b8] sm:$0xff]
  %v70 = vld [vmem:[%s0 + $0x1c0] sm:$0xff]
  %v71 = vld [vmem:[%s0 + $0x1c8] sm:$0xff]
  %v72 = vld [vmem:[%s0 + $0x1d0] sm:$0xff]
  %v73 = vld [vmem:[%s0 + $0x1d8] sm:$0xff]
  %v74 = vld [vmem:[%s0 + $0x1e0] sm:$0xff]
  %v75 = vld [vmem:[%s0 + $0x1e8] sm:$0xff]
  %v76 = vld [vmem:[%s0 + $0x1f0] sm:$0xff]
  %v77 = vld [vmem:[%s0 + $0x1f8] sm:$0xff]
  %v78 = vld [vmem:[%s1] sm:$0xff]
  %v79 = vld [vmem:[%s1 + $0x8] sm:$0xff]
  %v80 = vld [vmem:[%s1 + $0x10] sm:$0xff]
  %v81 = vld [vmem:[%s1 + $0x18] sm:$0xff]
  %v82 = vld [vmem:[%s1 + $0x20] sm:$0xff]
  %v83 = vld [vmem:[%s1 + $0x28] sm:$0xff]
  %v84 = vld [vmem:[%s1 + $0x30] sm:$0xff]
  %v85 = vld [vmem:[%s1 + $0x38] sm:$0xff]
  %v86 = vld [vmem:[%s1 + $0x40] sm:$0xff]
  %v87 = vld [vmem:[%s1 + $0x48] sm:$0xff]
  %v88 = vld [vmem:[%s1 + $0x50] sm:$0xff]
  %v89 = vld [vmem:[%s1 + $0x58] sm:$0xff]
  %v90 = vld [vmem:[%s1 + $0x60] sm:$0xff]
  %v91 = vld [vmem:[%s1 + $0x68] sm:$0xff]
  %v92 = vld [vmem:[%s1 + $0x70] sm:$0xff]
  %v93 = vld [vmem:[%s1 + $0x78] sm:$0xff]
  %v94 = vld [vmem:[%s2] sm:$0x1]
  %v96 = vlaneseq
  %v97 = vshrl.u32 %v96, 7
  %v98 = vsub.s32 0, %v97
  %v99 = vrot.slane %v94, %v98
  %101 = vmatprep.subr.mxu0 0.0
  %102 = vmatpush1.msra.mxu0 %v93
  %103 = vmatprep.subr.mxu0 0.0
  %104 = vmatpush1.msra.mxu0 %v92
  %105 = vmatprep.subr.mxu0 0.0
  %106 = vmatpush1.msra.mxu0 %v91
  %107 = vmatprep.subr.mxu0 0.0
  %108 = vmatpush1.msra.mxu0 %v90
  %109 = vmatprep.subr.mxu0 0.0
  %110 = vmatpush1.msra.mxu0 %v89
  %111 = vmatprep.subr.mxu0 0.0
  %112 = vmatpush1.msra.mxu0 %v88
  %113 = vmatprep.subr.mxu0 0.0
  %114 = vmatpush1.msra.mxu0 %v87
  %115 = vmatprep.subr.mxu0 0.0
  %116 = vmatpush1.msra.mxu0 %v86
  %117 = vmatprep.subr.mxu0 0.0
  %118 = vmatpush1.msra.mxu0 %v85
  %119 = vmatprep.subr.mxu0 0.0
  %120 = vmatpush1.msra.mxu0 %v84
  %121 = vmatprep.subr.mxu0 0.0
  %122 = vmatpush1.msra.mxu0 %v83
  %123 = vmatprep.subr.mxu0 0.0
  %124 = vmatpush1.msra.mxu0 %v82
  %125 = vmatprep.subr.mxu0 0.0
  %126 = vmatpush1.msra.mxu0 %v81
  %127 = vmatprep.subr.mxu0 0.0
  %128 = vmatpush1.msra.mxu0 %v80
  %129 = vmatprep.subr.mxu0 0.0
  %130 = vmatpush1.msra.mxu0 %v79
  %131 = vmatprep.subr.mxu0 0.0
  %132 = vmatpush1.msra.mxu0 %v78
  %133 = vmatprep.subr.mxu0 0.0
  %134 = vmatpush2.msra.mxu0 0.0
  %135 = vmatprep.subr.mxu0 0.0
  %136 = vmatpush2.msra.mxu0 0.0
  %137 = vmatprep.subr.mxu0 0.0
  %138 = vmatpush2.msra.mxu0 0.0
  %139 = vmatprep.subr.mxu0 0.0
  %140 = vmatpush2.msra.mxu0 0.0
  %141 = vmatprep.subr.mxu0 0.0
  %142 = vmatpush2.msra.mxu0 0.0
  %143 = vmatprep.subr.mxu0 0.0
  %144 = vmatpush2.msra.mxu0 0.0
  %145 = vmatprep.subr.mxu0 0.0
  %146 = vmatpush2.msra.mxu0 0.0
  %147 = vmatprep.subr.mxu0 0.0
  %148 = vmatpush2.msra.mxu0 0.0
  %149 = vmatprep.subr.mxu0 0.0
  %150 = vmatpush2.msra.mxu0 0.0
  %151 = vmatprep.subr.mxu0 0.0
  %152 = vmatpush2.msra.mxu0 0.0
  %153 = vmatprep.subr.mxu0 0.0
  %154 = vmatpush2.msra.mxu0 0.0
  %155 = vmatprep.subr.mxu0 0.0
  %156 = vmatpush2.msra.mxu0 0.0
  %157 = vmatprep.subr.mxu0 0.0
  %158 = vmatpush2.msra.mxu0 0.0
  %159 = vmatprep.subr.mxu0 0.0
  %160 = vmatpush2.msra.mxu0 0.0
  %161 = vmatprep.subr.mxu0 0.0
  %162 = vmatpush2.msra.mxu0 0.0
  %163 = vmatprep.subr.mxu0 0.0
  %164 = vmatpush2.msra.mxu0 0.0
  %165 = vmatprep.mubr.f32.mxu0 0.0
  %166 = vmatmul.mubr.f32.gmra.mxu0 %v14
  %v167 = vpop.f32.mrf.mxu0
  %v168 = vadd.f32 %v99, %v167
  %v169 = vpop.f32.mrf.mxu0
  %170 = vmatprep.mubr.f32.mxu0 0.0
  %171 = vmatmul.mubr.f32.gmra.mxu0 %v15
  %v172 = vpop.f32.mrf.mxu0
  %v173 = vadd.f32 %v99, %v172
  %v174 = vpop.f32.mrf.mxu0
  %175 = vmatprep.mubr.f32.mxu0 0.0
  %176 = vmatmul.mubr.f32.gmra.mxu0 %v16
  %v177 = vpop.f32.mrf.mxu0
  %v178 = vadd.f32 %v99, %v177
  %v179 = vpop.f32.mrf.mxu0
  %180 = vmatprep.mubr.f32.mxu0 0.0
  %181 = vmatmul.mubr.f32.gmra.mxu0 %v17
  %v182 = vpop.f32.mrf.mxu0
  %v183 = vadd.f32 %v99, %v182
  %v184 = vpop.f32.mrf.mxu0
  %185 = vmatprep.mubr.f32.mxu0 0.0
  %186 = vmatmul.mubr.f32.gmra.mxu0 %v18
  %v187 = vpop.f32.mrf.mxu0
  %v188 = vadd.f32 %v99, %v187
  %v189 = vpop.f32.mrf.mxu0
  %190 = vmatprep.mubr.f32.mxu0 0.0
  %191 = vmatmul.mubr.f32.gmra.mxu0 %v19
  %v192 = vpop.f32.mrf.mxu0
  %v193 = vadd.f32 %v99, %v192
  %v194 = vpop.f32.mrf.mxu0
  %195 = vmatprep.mubr.f32.mxu0 0.0
  %196 = vmatmul.mubr.f32.gmra.mxu0 %v20
  %v197 = vpop.f32.mrf.mxu0
  %v198 = vadd.f32 %v99, %v197
  %v199 = vpop.f32.mrf.mxu0
  %200 = vmatprep.mubr.f32.mxu0 0.0
  %201 = vmatmul.mubr.f32.gmra.mxu0 %v21
  %v202 = vpop.f32.mrf.mxu0
  %v203 = vadd.f32 %v99, %v202
  %v204 = vpop.f32.mrf.mxu0
  %205 = vmatprep.mubr.f32.mxu0 0.0
  %206 = vmatmul.mubr.f32.gmra.mxu0 %v22
  %v207 = vpop.f32.mrf.mxu0
  %v208 = vadd.f32 %v99, %v207
  %v209 = vpop.f32.mrf.mxu0
  %210 = vmatprep.mubr.f32.mxu0 0.0
  %211 = vmatmul.mubr.f32.gmra.mxu0 %v23
  %v212 = vpop.f32.mrf.mxu0
  %v213 = vadd.f32 %v99, %v212
  %v214 = vpop.f32.mrf.mxu0
  %215 = vmatprep.mubr.f32.mxu0 0.0
  %216 = vmatmul.mubr.f32.gmra.mxu0 %v24
  %v217 = vpop.f32.mrf.mxu0
  %v218 = vadd.f32 %v99, %v217
  %v219 = vpop.f32.mrf.mxu0
  %220 = vmatprep.mubr.f32.mxu0 0.0
  %221 = vmatmul.mubr.f32.gmra.mxu0 %v25
  %v222 = vpop.f32.mrf.mxu0
  %v223 = vadd.f32 %v99, %v222
  %v224 = vpop.f32.mrf.mxu0
  %225 = vmatprep.mubr.f32.mxu0 0.0
  %226 = vmatmul.mubr.f32.gmra.mxu0 %v26
  %v227 = vpop.f32.mrf.mxu0
  %v228 = vadd.f32 %v99, %v227
  %v229 = vpop.f32.mrf.mxu0
  %230 = vmatprep.mubr.f32.mxu0 0.0
  %231 = vmatmul.mubr.f32.gmra.mxu0 %v27
  %v232 = vpop.f32.mrf.mxu0
  %v233 = vadd.f32 %v99, %v232
  %v234 = vpop.f32.mrf.mxu0
  %235 = vmatprep.mubr.f32.mxu0 0.0
  %236 = vmatmul.mubr.f32.gmra.mxu0 %v28
  %v237 = vpop.f32.mrf.mxu0
  %v238 = vadd.f32 %v99, %v237
  %v239 = vpop.f32.mrf.mxu0
  %240 = vmatprep.mubr.f32.mxu0 0.0
  %241 = vmatmul.mubr.f32.gmra.mxu0 %v29
  %v242 = vpop.f32.mrf.mxu0
  %v243 = vadd.f32 %v99, %v242
  %v244 = vpop.f32.mrf.mxu0
  %245 = vmatprep.mubr.f32.mxu0 0.0
  %246 = vmatmul.mubr.f32.gmra.mxu0 %v30
  %v247 = vpop.f32.mrf.mxu0
  %v248 = vadd.f32 %v99, %v247
  %v249 = vpop.f32.mrf.mxu0
  %250 = vmatprep.mubr.f32.mxu0 0.0
  %251 = vmatmul.mubr.f32.gmra.mxu0 %v31
  %v252 = vpop.f32.mrf.mxu0
  %v253 = vadd.f32 %v99, %v252
  %v254 = vpop.f32.mrf.mxu0
  %255 = vmatprep.mubr.f32.mxu0 0.0
  %256 = vmatmul.mubr.f32.gmra.mxu0 %v32
  %v257 = vpop.f32.mrf.mxu0
  %v258 = vadd.f32 %v99, %v257
  %v259 = vpop.f32.mrf.mxu0
  %260 = vmatprep.mubr.f32.mxu0 0.0
  %261 = vmatmul.mubr.f32.gmra.mxu0 %v33
  %v262 = vpop.f32.mrf.mxu0
  %v263 = vadd.f32 %v99, %v262
  %v264 = vpop.f32.mrf.mxu0
  %265 = vmatprep.mubr.f32.mxu0 0.0
  %266 = vmatmul.mubr.f32.gmra.mxu0 %v34
  %v267 = vpop.f32.mrf.mxu0
  %v268 = vadd.f32 %v99, %v267
  %v269 = vpop.f32.mrf.mxu0
  %270 = vmatprep.mubr.f32.mxu0 0.0
  %271 = vmatmul.mubr.f32.gmra.mxu0 %v35
  %v272 = vpop.f32.mrf.mxu0
  %v273 = vadd.f32 %v99, %v272
  %v274 = vpop.f32.mrf.mxu0
  %275 = vmatprep.mubr.f32.mxu0 0.0
  %276 = vmatmul.mubr.f32.gmra.mxu0 %v36
  %v277 = vpop.f32.mrf.mxu0
  %v278 = vadd.f32 %v99, %v277
  %v279 = vpop.f32.mrf.mxu0
  %280 = vmatprep.mubr.f32.mxu0 0.0
  %281 = vmatmul.mubr.f32.gmra.mxu0 %v37
  %v282 = vpop.f32.mrf.mxu0
  %v283 = vadd.f32 %v99, %v282
  %v284 = vpop.f32.mrf.mxu0
  %285 = vmatprep.mubr.f32.mxu0 0.0
  %286 = vmatmul.mubr.f32.gmra.mxu0 %v38
  %v287 = vpop.f32.mrf.mxu0
  %v288 = vadd.f32 %v99, %v287
  %v289 = vpop.f32.mrf.mxu0
  %290 = vmatprep.mubr.f32.mxu0 0.0
  %291 = vmatmul.mubr.f32.gmra.mxu0 %v39
  %v292 = vpop.f32.mrf.mxu0
  %v293 = vadd.f32 %v99, %v292
  %v294 = vpop.f32.mrf.mxu0
  %295 = vmatprep.mubr.f32.mxu0 0.0
  %296 = vmatmul.mubr.f32.gmra.mxu0 %v40
  %v297 = vpop.f32.mrf.mxu0
  %v298 = vadd.f32 %v99, %v297
  %v299 = vpop.f32.mrf.mxu0
  %300 = vmatprep.mubr.f32.mxu0 0.0
  %301 = vmatmul.mubr.f32.gmra.mxu0 %v41
  %v302 = vpop.f32.mrf.mxu0
  %v303 = vadd.f32 %v99, %v302
  %v304 = vpop.f32.mrf.mxu0
  %305 = vmatprep.mubr.f32.mxu0 0.0
  %306 = vmatmul.mubr.f32.gmra.mxu0 %v42
  %v307 = vpop.f32.mrf.mxu0
  %v308 = vadd.f32 %v99, %v307
  %v309 = vpop.f32.mrf.mxu0
  %310 = vmatprep.mubr.f32.mxu0 0.0
  %311 = vmatmul.mubr.f32.gmra.mxu0 %v43
  %v312 = vpop.f32.mrf.mxu0
  %v313 = vadd.f32 %v99, %v312
  %v314 = vpop.f32.mrf.mxu0
  %315 = vmatprep.mubr.f32.mxu0 0.0
  %316 = vmatmul.mubr.f32.gmra.mxu0 %v44
  %v317 = vpop.f32.mrf.mxu0
  %v318 = vadd.f32 %v99, %v317
  %v319 = vpop.f32.mrf.mxu0
  %320 = vmatprep.mubr.f32.mxu0 0.0
  %321 = vmatmul.mubr.f32.gmra.mxu0 %v45
  %v322 = vpop.f32.mrf.mxu0
  %v323 = vadd.f32 %v99, %v322
  %v324 = vpop.f32.mrf.mxu0
  %325 = vmatprep.mubr.f32.mxu0 0.0
  %326 = vmatmul.mubr.f32.gmra.mxu0 %v46
  %v327 = vpop.f32.mrf.mxu0
  %v328 = vadd.f32 %v99, %v327
  %v329 = vpop.f32.mrf.mxu0
  %330 = vmatprep.mubr.f32.mxu0 0.0
  %331 = vmatmul.mubr.f32.gmra.mxu0 %v47
  %v332 = vpop.f32.mrf.mxu0
  %v333 = vadd.f32 %v99, %v332
  %v334 = vpop.f32.mrf.mxu0
  %335 = vmatprep.mubr.f32.mxu0 0.0
  %336 = vmatmul.mubr.f32.gmra.mxu0 %v48
  %v337 = vpop.f32.mrf.mxu0
  %v338 = vadd.f32 %v99, %v337
  %v339 = vpop.f32.mrf.mxu0
  %340 = vmatprep.mubr.f32.mxu0 0.0
  %341 = vmatmul.mubr.f32.gmra.mxu0 %v49
  %v342 = vpop.f32.mrf.mxu0
  %v343 = vadd.f32 %v99, %v342
  %v344 = vpop.f32.mrf.mxu0
  %345 = vmatprep.mubr.f32.mxu0 0.0
  %346 = vmatmul.mubr.f32.gmra.mxu0 %v50
  %v347 = vpop.f32.mrf.mxu0
  %v348 = vadd.f32 %v99, %v347
  %v349 = vpop.f32.mrf.mxu0
  %350 = vmatprep.mubr.f32.mxu0 0.0
  %351 = vmatmul.mubr.f32.gmra.mxu0 %v51
  %v352 = vpop.f32.mrf.mxu0
  %v353 = vadd.f32 %v99, %v352
  %v354 = vpop.f32.mrf.mxu0
  %355 = vmatprep.mubr.f32.mxu0 0.0
  %356 = vmatmul.mubr.f32.gmra.mxu0 %v52
  %v357 = vpop.f32.mrf.mxu0
  %v358 = vadd.f32 %v99, %v357
  %v359 = vpop.f32.mrf.mxu0
  %360 = vmatprep.mubr.f32.mxu0 0.0
  %361 = vmatmul.mubr.f32.gmra.mxu0 %v53
  %v362 = vpop.f32.mrf.mxu0
  %v363 = vadd.f32 %v99, %v362
  %v364 = vpop.f32.mrf.mxu0
  %365 = vmatprep.mubr.f32.mxu0 0.0
  %366 = vmatmul.mubr.f32.gmra.mxu0 %v54
  %v367 = vpop.f32.mrf.mxu0
  %v368 = vadd.f32 %v99, %v367
  %v369 = vpop.f32.mrf.mxu0
  %370 = vmatprep.mubr.f32.mxu0 0.0
  %371 = vmatmul.mubr.f32.gmra.mxu0 %v55
  %v372 = vpop.f32.mrf.mxu0
  %v373 = vadd.f32 %v99, %v372
  %v374 = vpop.f32.mrf.mxu0
  %375 = vmatprep.mubr.f32.mxu0 0.0
  %376 = vmatmul.mubr.f32.gmra.mxu0 %v56
  %v377 = vpop.f32.mrf.mxu0
  %v378 = vadd.f32 %v99, %v377
  %v379 = vpop.f32.mrf.mxu0
  %380 = vmatprep.mubr.f32.mxu0 0.0
  %381 = vmatmul.mubr.f32.gmra.mxu0 %v57
  %v382 = vpop.f32.mrf.mxu0
  %v383 = vadd.f32 %v99, %v382
  %v384 = vpop.f32.mrf.mxu0
  %385 = vmatprep.mubr.f32.mxu0 0.0
  %386 = vmatmul.mubr.f32.gmra.mxu0 %v58
  %v387 = vpop.f32.mrf.mxu0
  %v388 = vadd.f32 %v99, %v387
  %v389 = vpop.f32.mrf.mxu0
  %390 = vmatprep.mubr.f32.mxu0 0.0
  %391 = vmatmul.mubr.f32.gmra.mxu0 %v59
  %v392 = vpop.f32.mrf.mxu0
  %v393 = vadd.f32 %v99, %v392
  %v394 = vpop.f32.mrf.mxu0
  %395 = vmatprep.mubr.f32.mxu0 0.0
  %396 = vmatmul.mubr.f32.gmra.mxu0 %v60
  %v397 = vpop.f32.mrf.mxu0
  %v398 = vadd.f32 %v99, %v397
  %v399 = vpop.f32.mrf.mxu0
  %400 = vmatprep.mubr.f32.mxu0 0.0
  %401 = vmatmul.mubr.f32.gmra.mxu0 %v61
  %v402 = vpop.f32.mrf.mxu0
  %v403 = vadd.f32 %v99, %v402
  %v404 = vpop.f32.mrf.mxu0
  %405 = vmatprep.mubr.f32.mxu0 0.0
  %406 = vmatmul.mubr.f32.gmra.mxu0 %v62
  %v407 = vpop.f32.mrf.mxu0
  %v408 = vadd.f32 %v99, %v407
  %v409 = vpop.f32.mrf.mxu0
  %410 = vmatprep.mubr.f32.mxu0 0.0
  %411 = vmatmul.mubr.f32.gmra.mxu0 %v63
  %v412 = vpop.f32.mrf.mxu0
  %v413 = vadd.f32 %v99, %v412
  %v414 = vpop.f32.mrf.mxu0
  %415 = vmatprep.mubr.f32.mxu0 0.0
  %416 = vmatmul.mubr.f32.gmra.mxu0 %v64
  %v417 = vpop.f32.mrf.mxu0
  %v418 = vadd.f32 %v99, %v417
  %v419 = vpop.f32.mrf.mxu0
  %420 = vmatprep.mubr.f32.mxu0 0.0
  %421 = vmatmul.mubr.f32.gmra.mxu0 %v65
  %v422 = vpop.f32.mrf.mxu0
  %v423 = vadd.f32 %v99, %v422
  %v424 = vpop.f32.mrf.mxu0
  %425 = vmatprep.mubr.f32.mxu0 0.0
  %426 = vmatmul.mubr.f32.gmra.mxu0 %v66
  %v427 = vpop.f32.mrf.mxu0
  %v428 = vadd.f32 %v99, %v427
  %v429 = vpop.f32.mrf.mxu0
  %430 = vmatprep.mubr.f32.mxu0 0.0
  %431 = vmatmul.mubr.f32.gmra.mxu0 %v67
  %v432 = vpop.f32.mrf.mxu0
  %v433 = vadd.f32 %v99, %v432
  %v434 = vpop.f32.mrf.mxu0
  %435 = vmatprep.mubr.f32.mxu0 0.0
  %436 = vmatmul.mubr.f32.gmra.mxu0 %v68
  %v437 = vpop.f32.mrf.mxu0
  %v438 = vadd.f32 %v99, %v437
  %v439 = vpop.f32.mrf.mxu0
  %440 = vmatprep.mubr.f32.mxu0 0.0
  %441 = vmatmul.mubr.f32.gmra.mxu0 %v69
  %v442 = vpop.f32.mrf.mxu0
  %v443 = vadd.f32 %v99, %v442
  %v444 = vpop.f32.mrf.mxu0
  %445 = vmatprep.mubr.f32.mxu0 0.0
  %446 = vmatmul.mubr.f32.gmra.mxu0 %v70
  %v447 = vpop.f32.mrf.mxu0
  %v448 = vadd.f32 %v99, %v447
  %v449 = vpop.f32.mrf.mxu0
  %450 = vmatprep.mubr.f32.mxu0 0.0
  %451 = vmatmul.mubr.f32.gmra.mxu0 %v71
  %v452 = vpop.f32.mrf.mxu0
  %v453 = vadd.f32 %v99, %v452
  %v454 = vpop.f32.mrf.mxu0
  %455 = vmatprep.mubr.f32.mxu0 0.0
  %456 = vmatmul.mubr.f32.gmra.mxu0 %v72
  %v457 = vpop.f32.mrf.mxu0
  %v458 = vadd.f32 %v99, %v457
  %v459 = vpop.f32.mrf.mxu0
  %460 = vmatprep.mubr.f32.mxu0 0.0
  %461 = vmatmul.mubr.f32.gmra.mxu0 %v73
  %v462 = vpop.f32.mrf.mxu0
  %v463 = vadd.f32 %v99, %v462
  %v464 = vpop.f32.mrf.mxu0
  %465 = vmatprep.mubr.f32.mxu0 0.0
  %466 = vmatmul.mubr.f32.gmra.mxu0 %v74
  %v467 = vpop.f32.mrf.mxu0
  %v468 = vadd.f32 %v99, %v467
  %v469 = vpop.f32.mrf.mxu0
  %470 = vmatprep.mubr.f32.mxu0 0.0
  %471 = vmatmul.mubr.f32.gmra.mxu0 %v75
  %v472 = vpop.f32.mrf.mxu0
  %v473 = vadd.f32 %v99, %v472
  %v474 = vpop.f32.mrf.mxu0
  %475 = vmatprep.mubr.f32.mxu0 0.0
  %476 = vmatmul.mubr.f32.gmra.mxu0 %v76
  %v477 = vpop.f32.mrf.mxu0
  %v478 = vadd.f32 %v99, %v477
  %v479 = vpop.f32.mrf.mxu0
  %480 = vmatprep.mubr.f32.mxu0 0.0
  %481 = vmatmul.mubr.f32.gmra.mxu0 %v77
  %v482 = vpop.f32.mrf.mxu0
  %v483 = vadd.f32 %v99, %v482
  %v484 = vpop.f32.mrf.mxu0
  %485 = vdwg.mxu0
  %vm486 = vcmask 64512
  %487 = vst.msk [vmem:[%s3] sm:$0xff] %vm486, %v168
  %488 = vst.msk [vmem:[%s3 + $0x8] sm:$0xff] %vm486, %v173
  %489 = vst.msk [vmem:[%s3 + $0x10] sm:$0xff] %vm486, %v178
  %490 = vst.msk [vmem:[%s3 + $0x18] sm:$0xff] %vm486, %v183
  %491 = vst.msk [vmem:[%s3 + $0x20] sm:$0xff] %vm486, %v188
  %492 = vst.msk [vmem:[%s3 + $0x28] sm:$0xff] %vm486, %v193
  %493 = vst.msk [vmem:[%s3 + $0x30] sm:$0xff] %vm486, %v198
  %494 = vst.msk [vmem:[%s3 + $0x38] sm:$0xff] %vm486, %v203
  %495 = vst.msk [vmem:[%s3 + $0x40] sm:$0xff] %vm486, %v208
  %496 = vst.msk [vmem:[%s3 + $0x48] sm:$0xff] %vm486, %v213
  %497 = vst.msk [vmem:[%s3 + $0x50] sm:$0xff] %vm486, %v218
  %498 = vst.msk [vmem:[%s3 + $0x58] sm:$0xff] %vm486, %v223
  %499 = vst.msk [vmem:[%s3 + $0x60] sm:$0xff] %vm486, %v228
  %500 = vst.msk [vmem:[%s3 + $0x68] sm:$0xff] %vm486, %v233
  %501 = vst.msk [vmem:[%s3 + $0x70] sm:$0xff] %vm486, %v238
  %502 = vst.msk [vmem:[%s3 + $0x78] sm:$0xff] %vm486, %v243
  %503 = vst.msk [vmem:[%s3 + $0x80] sm:$0xff] %vm486, %v248
  %504 = vst.msk [vmem:[%s3 + $0x88] sm:$0xff] %vm486, %v253
  %505 = vst.msk [vmem:[%s3 + $0x90] sm:$0xff] %vm486, %v258
  %506 = vst.msk [vmem:[%s3 + $0x98] sm:$0xff] %vm486, %v263
  %507 = vst.msk [vmem:[%s3 + $0xa0] sm:$0xff] %vm486, %v268
  %508 = vst.msk [vmem:[%s3 + $0xa8] sm:$0xff] %vm486, %v273
  %509 = vst.msk [vmem:[%s3 + $0xb0] sm:$0xff] %vm486, %v278
  %510 = vst.msk [vmem:[%s3 + $0xb8] sm:$0xff] %vm486, %v283
  %511 = vst.msk [vmem:[%s3 + $0xc0] sm:$0xff] %vm486, %v288
  %512 = vst.msk [vmem:[%s3 + $0xc8] sm:$0xff] %vm486, %v293
  %513 = vst.msk [vmem:[%s3 + $0xd0] sm:$0xff] %vm486, %v298
  %514 = vst.msk [vmem:[%s3 + $0xd8] sm:$0xff] %vm486, %v303
  %515 = vst.msk [vmem:[%s3 + $0xe0] sm:$0xff] %vm486, %v308
  %516 = vst.msk [vmem:[%s3 + $0xe8] sm:$0xff] %vm486, %v313
  %517 = vst.msk [vmem:[%s3 + $0xf0] sm:$0xff] %vm486, %v318
  %518 = vst.msk [vmem:[%s3 + $0xf8] sm:$0xff] %vm486, %v323
  %519 = vst.msk [vmem:[%s3 + $0x100] sm:$0xff] %vm486, %v328
  %520 = vst.msk [vmem:[%s3 + $0x108] sm:$0xff] %vm486, %v333
  %521 = vst.msk [vmem:[%s3 + $0x110] sm:$0xff] %vm486, %v338
  %522 = vst.msk [vmem:[%s3 + $0x118] sm:$0xff] %vm486, %v343
  %523 = vst.msk [vmem:[%s3 + $0x120] sm:$0xff] %vm486, %v348
  %524 = vst.msk [vmem:[%s3 + $0x128] sm:$0xff] %vm486, %v353
  %525 = vst.msk [vmem:[%s3 + $0x130] sm:$0xff] %vm486, %v358
  %526 = vst.msk [vmem:[%s3 + $0x138] sm:$0xff] %vm486, %v363
  %527 = vst.msk [vmem:[%s3 + $0x140] sm:$0xff] %vm486, %v368
  %528 = vst.msk [vmem:[%s3 + $0x148] sm:$0xff] %vm486, %v373
  %529 = vst.msk [vmem:[%s3 + $0x150] sm:$0xff] %vm486, %v378
  %530 = vst.msk [vmem:[%s3 + $0x158] sm:$0xff] %vm486, %v383
  %531 = vst.msk [vmem:[%s3 + $0x160] sm:$0xff] %vm486, %v388
  %532 = vst.msk [vmem:[%s3 + $0x168] sm:$0xff] %vm486, %v393
  %533 = vst.msk [vmem:[%s3 + $0x170] sm:$0xff] %vm486, %v398
  %534 = vst.msk [vmem:[%s3 + $0x178] sm:$0xff] %vm486, %v403
  %535 = vst.msk [vmem:[%s3 + $0x180] sm:$0xff] %vm486, %v408
  %536 = vst.msk [vmem:[%s3 + $0x188] sm:$0xff] %vm486, %v413
  %537 = vst.msk [vmem:[%s3 + $0x190] sm:$0xff] %vm486, %v418
  %538 = vst.msk [vmem:[%s3 + $0x198] sm:$0xff] %vm486, %v423
  %539 = vst.msk [vmem:[%s3 + $0x1a0] sm:$0xff] %vm486, %v428
  %540 = vst.msk [vmem:[%s3 + $0x1a8] sm:$0xff] %vm486, %v433
  %541 = vst.msk [vmem:[%s3 + $0x1b0] sm:$0xff] %vm486, %v438
  %542 = vst.msk [vmem:[%s3 + $0x1b8] sm:$0xff] %vm486, %v443
  %543 = vst.msk [vmem:[%s3 + $0x1c0] sm:$0xff] %vm486, %v448
  %544 = vst.msk [vmem:[%s3 + $0x1c8] sm:$0xff] %vm486, %v453
  %545 = vst.msk [vmem:[%s3 + $0x1d0] sm:$0xff] %vm486, %v458
  %546 = vst.msk [vmem:[%s3 + $0x1d8] sm:$0xff] %vm486, %v463
  %547 = vst.msk [vmem:[%s3 + $0x1e0] sm:$0xff] %vm486, %v468
  %548 = vst.msk [vmem:[%s3 + $0x1e8] sm:$0xff] %vm486, %v473
  %549 = vst.msk [vmem:[%s3 + $0x1f0] sm:$0xff] %vm486, %v478
  %550 = vst.msk [vmem:[%s3 + $0x1f8] sm:$0xff] %vm486, %v483
  // Predicated region
  $region14: #{encoder_forward.7} parent=0 // pred_check
    _
  $region15: #{encoder_forward.7} parent=0 // pred_check_branch
    %552 = sbr.rel (0) target = $region17
  $region16: #{encoder_forward.7} parent=0 // pred_region
    _
  $region17: #{encoder_forward.7} parent=0 // pred_fallthru
    _
  // Predicated region
  $region18: #{encoder_forward.7} parent=0 // pred_check
    _
  $region19: #{encoder_forward.7} parent=0 // pred_check_branch
    %554 = sbr.rel (0) target = $region21
  $region20: #{encoder_forward.7} parent=0 // pred_region
    _
  $region21: #{encoder_forward.7} parent=0 // pred_fallthru
    _

// kernel: encoder_forward.8
$region0: #{encoder_forward.8}
  #allocation0 [shape = 'u32[]', space=smem, size = 0x4, offset = 0x4, fixed_abs, tag = 'smem constant byte address 0x4 - core index']
  #allocation1 [shape = 'u32[144,128]{1,0:T(1,128)}', space=vmem, size = 0x12000, scoped, tag = 'internal scratch']
  %s0 = inlined_call_operand.vmem [shape: f32[512,8], index: 0, kind: input, shape index: {}]
  %s1 = inlined_call_operand.vmem [shape: f32[8,8], index: 1, kind: input, shape index: {}]
  %s2 = inlined_call_operand.vmem [shape: f32[1,8], index: 2, kind: input, shape index: {}]
  %s3 = inlined_call_operand.vmem [shape: f32[512,8], index: 3, kind: output, shape index: {}]
  %s4 = sld [smem:[#allocation0]]
  $region22: #{encoder_forward.8} parent=0
    _
  %s6 = ssub.s32 1, %s4
  %s7 = scalar_select 0, %s6, %s4
  // Predicated region
  $region2: #{encoder_forward.8} parent=0 // pred_check
    _
  $region3: #{encoder_forward.8} parent=0 // pred_check_branch
    %9 = sbr.rel (0) target = $region5
  $region4: #{encoder_forward.8} parent=0 // pred_region
    _
  $region5: #{encoder_forward.8} parent=0 // pred_fallthru
    _
  // Predicated region
  $region6: #{encoder_forward.8} parent=0 // pred_check
    _
  $region7: #{encoder_forward.8} parent=0 // pred_check_branch
    %11 = sbr.rel (0) target = $region9
  $region8: #{encoder_forward.8} parent=0 // pred_region
    _
  $region9: #{encoder_forward.8} parent=0 // pred_fallthru
    _
  // Predicated region
  $region10: #{encoder_forward.8} parent=0 // pred_check
    _
  $region11: #{encoder_forward.8} parent=0 // pred_check_branch
    %13 = sbr.rel (0) target = $region13
  $region12: #{encoder_forward.8} parent=0 // pred_region
    _
  $region13: #{encoder_forward.8} parent=0 // pred_fallthru
    _
  %v14 = vld [vmem:[%s0] sm:$0xff]
  %v15 = vld [vmem:[%s0 + $0x8] sm:$0xff]
  %v16 = vld [vmem:[%s0 + $0x10] sm:$0xff]
  %v17 = vld [vmem:[%s0 + $0x18] sm:$0xff]
  %v18 = vld [vmem:[%s0 + $0x20] sm:$0xff]
  %v19 = vld [vmem:[%s0 + $0x28] sm:$0xff]
  %v20 = vld [vmem:[%s0 + $0x30] sm:$0xff]
  %v21 = vld [vmem:[%s0 + $0x38] sm:$0xff]
  %v22 = vld [vmem:[%s0 + $0x40] sm:$0xff]
  %v23 = vld [vmem:[%s0 + $0x48] sm:$0xff]
  %v24 = vld [vmem:[%s0 + $0x50] sm:$0xff]
  %v25 = vld [vmem:[%s0 + $0x58] sm:$0xff]
  %v26 = vld [vmem:[%s0 + $0x60] sm:$0xff]
  %v27 = vld [vmem:[%s0 + $0x68] sm:$0xff]
  %v28 = vld [vmem:[%s0 + $0x70] sm:$0xff]
  %v29 = vld [vmem:[%s0 + $0x78] sm:$0xff]
  %v30 = vld [vmem:[%s0 + $0x80] sm:$0xff]
  %v31 = vld [vmem:[%s0 + $0x88] sm:$0xff]
  %v32 = vld [vmem:[%s0 + $0x90] sm:$0xff]
  %v33 = vld [vmem:[%s0 + $0x98] sm:$0xff]
  %v34 = vld [vmem:[%s0 + $0xa0] sm:$0xff]
  %v35 = vld [vmem:[%s0 + $0xa8] sm:$0xff]
  %v36 = vld [vmem:[%s0 + $0xb0] sm:$0xff]
  %v37 = vld [vmem:[%s0 + $0xb8] sm:$0xff]
  %v38 = vld [vmem:[%s0 + $0xc0] sm:$0xff]
  %v39 = vld [vmem:[%s0 + $0xc8] sm:$0xff]
  %v40 = vld [vmem:[%s0 + $0xd0] sm:$0xff]
  %v41 = vld [vmem:[%s0 + $0xd8] sm:$0xff]
  %v42 = vld [vmem:[%s0 + $0xe0] sm:$0xff]
  %v43 = vld [vmem:[%s0 + $0xe8] sm:$0xff]
  %v44 = vld [vmem:[%s0 + $0xf0] sm:$0xff]
  %v45 = vld [vmem:[%s0 + $0xf8] sm:$0xff]
  %v46 = vld [vmem:[%s0 + $0x100] sm:$0xff]
  %v47 = vld [vmem:[%s0 + $0x108] sm:$0xff]
  %v48 = vld [vmem:[%s0 + $0x110] sm:$0xff]
  %v49 = vld [vmem:[%s0 + $0x118] sm:$0xff]
  %v50 = vld [vmem:[%s0 + $0x120] sm:$0xff]
  %v51 = vld [vmem:[%s0 + $0x128] sm:$0xff]
  %v52 = vld [vmem:[%s0 + $0x130] sm:$0xff]
  %v53 = vld [vmem:[%s0 + $0x138] sm:$0xff]
  %v54 = vld [vmem:[%s0 + $0x140] sm:$0xff]
  %v55 = vld [vmem:[%s0 + $0x148] sm:$0xff]
  %v56 = vld [vmem:[%s0 + $0x150] sm:$0xff]
  %v57 = vld [vmem:[%s0 + $0x158] sm:$0xff]
  %v58 = vld [vmem:[%s0 + $0x160] sm:$0xff]
  %v59 = vld [vmem:[%s0 + $0x168] sm:$0xff]
  %v60 = vld [vmem:[%s0 + $0x170] sm:$0xff]
  %v61 = vld [vmem:[%s0 + $0x178] sm:$0xff]
  %v62 = vld [vmem:[%s0 + $0x180] sm:$0xff]
  %v63 = vld [vmem:[%s0 + $0x188] sm:$0xff]
  %v64 = vld [vmem:[%s0 + $0x190] sm:$0xff]
  %v65 = vld [vmem:[%s0 + $0x198] sm:$0xff]
  %v66 = vld [vmem:[%s0 + $0x1a0] sm:$0xff]
  %v67 = vld [vmem:[%s0 + $0x1a8] sm:$0xff]
  %v68 = vld [vmem:[%s0 + $0x1b0] sm:$0xff]
  %v69 = vld [vmem:[%s0 + $0x1b8] sm:$0xff]
  %v70 = vld [vmem:[%s0 + $0x1c0] sm:$0xff]
  %v71 = vld [vmem:[%s0 + $0x1c8] sm:$0xff]
  %v72 = vld [vmem:[%s0 + $0x1d0] sm:$0xff]
  %v73 = vld [vmem:[%s0 + $0x1d8] sm:$0xff]
  %v74 = vld [vmem:[%s0 + $0x1e0] sm:$0xff]
  %v75 = vld [vmem:[%s0 + $0x1e8] sm:$0xff]
  %v76 = vld [vmem:[%s0 + $0x1f0] sm:$0xff]
  %v77 = vld [vmem:[%s0 + $0x1f8] sm:$0xff]
  %v78 = vmul.f32 %v14, %v14
  %v79 = vmul.f32 %v15, %v15
  %v80 = vmul.f32 %v16, %v16
  %v81 = vmul.f32 %v17, %v17
  %v82 = vmul.f32 %v18, %v18
  %v83 = vmul.f32 %v19, %v19
  %v84 = vmul.f32 %v20, %v20
  %v85 = vmul.f32 %v21, %v21
  %v86 = vmul.f32 %v22, %v22
  %v87 = vmul.f32 %v23, %v23
  %v88 = vmul.f32 %v24, %v24
  %v89 = vmul.f32 %v25, %v25
  %v90 = vmul.f32 %v26, %v26
  %v91 = vmul.f32 %v27, %v27
  %v92 = vmul.f32 %v28, %v28
  %v93 = vmul.f32 %v29, %v29
  %v94 = vmul.f32 %v30, %v30
  %v95 = vmul.f32 %v31, %v31
  %v96 = vmul.f32 %v32, %v32
  %v97 = vmul.f32 %v33, %v33
  %v98 = vmul.f32 %v34, %v34
  %v99 = vmul.f32 %v35, %v35
  %v100 = vmul.f32 %v36, %v36
  %v101 = vmul.f32 %v37, %v37
  %v102 = vmul.f32 %v38, %v38
  %v103 = vmul.f32 %v39, %v39
  %v104 = vmul.f32 %v40, %v40
  %v105 = vmul.f32 %v41, %v41
  %v106 = vmul.f32 %v42, %v42
  %v107 = vmul.f32 %v43, %v43
  %v108 = vmul.f32 %v44, %v44
  %v109 = vmul.f32 %v45, %v45
  %v110 = vmul.f32 %v46, %v46
  %v111 = vmul.f32 %v47, %v47
  %v112 = vmul.f32 %v48, %v48
  %v113 = vmul.f32 %v49, %v49
  %v114 = vmul.f32 %v50, %v50
  %v115 = vmul.f32 %v51, %v51
  %v116 = vmul.f32 %v52, %v52
  %v117 = vmul.f32 %v53, %v53
  %v118 = vmul.f32 %v54, %v54
  %v119 = vmul.f32 %v55, %v55
  %v120 = vmul.f32 %v56, %v56
  %v121 = vmul.f32 %v57, %v57
  %v122 = vmul.f32 %v58, %v58
  %v123 = vmul.f32 %v59, %v59
  %v124 = vmul.f32 %v60, %v60
  %v125 = vmul.f32 %v61, %v61
  %v126 = vmul.f32 %v62, %v62
  %v127 = vmul.f32 %v63, %v63
  %v128 = vmul.f32 %v64, %v64
  %v129 = vmul.f32 %v65, %v65
  %v130 = vmul.f32 %v66, %v66
  %v131 = vmul.f32 %v67, %v67
  %v132 = vmul.f32 %v68, %v68
  %v133 = vmul.f32 %v69, %v69
  %v134 = vmul.f32 %v70, %v70
  %v135 = vmul.f32 %v71, %v71
  %v136 = vmul.f32 %v72, %v72
  %v137 = vmul.f32 %v73, %v73
  %v138 = vmul.f32 %v74, %v74
  %v139 = vmul.f32 %v75, %v75
  %v140 = vmul.f32 %v76, %v76
  %v141 = vmul.f32 %v77, %v77
  %v142 = vld [vmem:[%s1] sm:$0xff]
  %v143 = vld [vmem:[%s2] sm:$0x1]
  %v145 = vlaneseq
  %v146 = vshrl.u32 %v145, 7
  %v147 = vsub.s32 0, %v146
  %v148 = vrot.slane %v143, %v147
  %vm150 = vcmask 64512
  %v152 = vsel %vm150, %v78, 0
  %v155 = vsel %vm150, %v79, 0
  %v158 = vsel %vm150, %v80, 0
  %v161 = vsel %vm150, %v81, 0
  %v164 = vsel %vm150, %v82, 0
  %v167 = vsel %vm150, %v83, 0
  %v170 = vsel %vm150, %v84, 0
  %v173 = vsel %vm150, %v85, 0
  %v176 = vsel %vm150, %v86, 0
  %v179 = vsel %vm150, %v87, 0
  %v182 = vsel %vm150, %v88, 0
  %v185 = vsel %vm150, %v89, 0
  %v188 = vsel %vm150, %v90, 0
  %v191 = vsel %vm150, %v91, 0
  %v194 = vsel %vm150, %v92, 0
  %v197 = vsel %vm150, %v93, 0
  %v200 = vsel %vm150, %v94, 0
  %v203 = vsel %vm150, %v95, 0
  %v206 = vsel %vm150, %v96, 0
  %v209 = vsel %vm150, %v97, 0
  %v212 = vsel %vm150, %v98, 0
  %v215 = vsel %vm150, %v99, 0
  %v218 = vsel %vm150, %v100, 0
  %v221 = vsel %vm150, %v101, 0
  %v224 = vsel %vm150, %v102, 0
  %v227 = vsel %vm150, %v103, 0
  %v230 = vsel %vm150, %v104, 0
  %v233 = vsel %vm150, %v105, 0
  %v236 = vsel %vm150, %v106, 0
  %v239 = vsel %vm150, %v107, 0
  %v242 = vsel %vm150, %v108, 0
  %v245 = vsel %vm150, %v109, 0
  %v248 = vsel %vm150, %v110, 0
  %v251 = vsel %vm150, %v111, 0
  %v254 = vsel %vm150, %v112, 0
  %v257 = vsel %vm150, %v113, 0
  %v260 = vsel %vm150, %v114, 0
  %v263 = vsel %vm150, %v115, 0
  %v266 = vsel %vm150, %v116, 0
  %v269 = vsel %vm150, %v117, 0
  %v272 = vsel %vm150, %v118, 0
  %v275 = vsel %vm150, %v119, 0
  %v278 = vsel %vm150, %v120, 0
  %v281 = vsel %vm150, %v121, 0
  %v284 = vsel %vm150, %v122, 0
  %v287 = vsel %vm150, %v123, 0
  %v290 = vsel %vm150, %v124, 0
  %v293 = vsel %vm150, %v125, 0
  %v296 = vsel %vm150, %v126, 0
  %v299 = vsel %vm150, %v127, 0
  %v302 = vsel %vm150, %v128, 0
  %v305 = vsel %vm150, %v129, 0
  %v308 = vsel %vm150, %v130, 0
  %v311 = vsel %vm150, %v131, 0
  %v314 = vsel %vm150, %v132, 0
  %v317 = vsel %vm150, %v133, 0
  %v320 = vsel %vm150, %v134, 0
  %v323 = vsel %vm150, %v135, 0
  %v326 = vsel %vm150, %v136, 0
  %v329 = vsel %vm150, %v137, 0
  %v332 = vsel %vm150, %v138, 0
  %v335 = vsel %vm150, %v139, 0
  %v338 = vsel %vm150, %v140, 0
  %v341 = vsel %vm150, %v141, 0
  %343 = vmatprep.subr.mxu0 0.0
  %344 = vmatpush1.msra.mxu0 0.0
  %345 = vmatprep.subr.mxu0 0.0
  %346 = vmatpush1.msra.mxu0 0.0
  %347 = vmatprep.subr.mxu0 0.0
  %348 = vmatpush1.msra.mxu0 0.0
  %349 = vmatprep.subr.mxu0 0.0
  %350 = vmatpush1.msra.mxu0 0.0
  %351 = vmatprep.subr.mxu0 0.0
  %352 = vmatpush1.msra.mxu0 0.0
  %353 = vmatprep.subr.mxu0 0.0
  %354 = vmatpush1.msra.mxu0 0.0
  %355 = vmatprep.subr.mxu0 0.0
  %356 = vmatpush1.msra.mxu0 0.0
  %357 = vmatprep.subr.mxu0 0.0
  %358 = vmatpush1.msra.mxu0 0.0
  %359 = vmatprep.subr.mxu0 0.0
  %360 = vmatpush1.msra.mxu0 0.0
  %361 = vmatprep.subr.mxu0 0.0
  %362 = vmatpush1.msra.mxu0 0.0
  %363 = vmatprep.subr.mxu0 0.0
  %364 = vmatpush1.msra.mxu0 0.0
  %365 = vmatprep.subr.mxu0 0.0
  %366 = vmatpush1.msra.mxu0 0.0
  %367 = vmatprep.subr.mxu0 0.0
  %368 = vmatpush1.msra.mxu0 0.0
  %369 = vmatprep.subr.mxu0 0.0
  %370 = vmatpush1.msra.mxu0 0.0
  %371 = vmatprep.subr.mxu0 0.0
  %372 = vmatpush1.msra.mxu0 0.0
  %373 = vmatprep.subr.mxu0 0.0
  %374 = vmatpush1.msra.mxu0 %v142
  %375 = vmatprep.subr.mxu0 0.0
  %376 = vmatpush2.msra.mxu0 0.0
  %377 = vmatprep.subr.mxu0 0.0
  %378 = vmatpush2.msra.mxu0 0.0
  %379 = vmatprep.subr.mxu0 0.0
  %380 = vmatpush2.msra.mxu0 0.0
  %381 = vmatprep.subr.mxu0 0.0
  %382 = vmatpush2.msra.mxu0 0.0
  %383 = vmatprep.subr.mxu0 0.0
  %384 = vmatpush2.msra.mxu0 0.0
  %385 = vmatprep.subr.mxu0 0.0
  %386 = vmatpush2.msra.mxu0 0.0
  %387 = vmatprep.subr.mxu0 0.0
  %388 = vmatpush2.msra.mxu0 0.0
  %389 = vmatprep.subr.mxu0 0.0
  %390 = vmatpush2.msra.mxu0 0.0
  %391 = vmatprep.subr.mxu0 0.0
  %392 = vmatpush2.msra.mxu0 0.0
  %393 = vmatprep.subr.mxu0 0.0
  %394 = vmatpush2.msra.mxu0 0.0
  %395 = vmatprep.subr.mxu0 0.0
  %396 = vmatpush2.msra.mxu0 0.0
  %397 = vmatprep.subr.mxu0 0.0
  %398 = vmatpush2.msra.mxu0 0.0
  %399 = vmatprep.subr.mxu0 0.0
  %400 = vmatpush2.msra.mxu0 0.0
  %401 = vmatprep.subr.mxu0 0.0
  %402 = vmatpush2.msra.mxu0 0.0
  %403 = vmatprep.subr.mxu0 0.0
  %404 = vmatpush2.msra.mxu0 0.0
  %405 = vmatprep.subr.mxu0 0.0
  %406 = vmatpush2.msra.mxu0 0.0
  %407 = vmatprep.mubr.f32.mxu0 0.0
  %408 = vmatmul.mubr.f32.gmra.mxu0 %v152
  %v409 = vpop.f32.mrf.mxu0
  %v410 = vadd.f32 %v148, %v409
  %v411 = vpop.f32.mrf.mxu0
  %412 = vmatprep.mubr.f32.mxu0 0.0
  %413 = vmatmul.mubr.f32.gmra.mxu0 %v155
  %v414 = vpop.f32.mrf.mxu0
  %v415 = vadd.f32 %v148, %v414
  %v416 = vpop.f32.mrf.mxu0
  %417 = vmatprep.mubr.f32.mxu0 0.0
  %418 = vmatmul.mubr.f32.gmra.mxu0 %v158
  %v419 = vpop.f32.mrf.mxu0
  %v420 = vadd.f32 %v148, %v419
  %v421 = vpop.f32.mrf.mxu0
  %422 = vmatprep.mubr.f32.mxu0 0.0
  %423 = vmatmul.mubr.f32.gmra.mxu0 %v161
  %v424 = vpop.f32.mrf.mxu0
  %v425 = vadd.f32 %v148, %v424
  %v426 = vpop.f32.mrf.mxu0
  %427 = vmatprep.mubr.f32.mxu0 0.0
  %428 = vmatmul.mubr.f32.gmra.mxu0 %v164
  %v429 = vpop.f32.mrf.mxu0
  %v430 = vadd.f32 %v148, %v429
  %v431 = vpop.f32.mrf.mxu0
  %432 = vmatprep.mubr.f32.mxu0 0.0
  %433 = vmatmul.mubr.f32.gmra.mxu0 %v167
  %v434 = vpop.f32.mrf.mxu0
  %v435 = vadd.f32 %v148, %v434
  %v436 = vpop.f32.mrf.mxu0
  %437 = vmatprep.mubr.f32.mxu0 0.0
  %438 = vmatmul.mubr.f32.gmra.mxu0 %v170
  %v439 = vpop.f32.mrf.mxu0
  %v440 = vadd.f32 %v148, %v439
  %v441 = vpop.f32.mrf.mxu0
  %442 = vmatprep.mubr.f32.mxu0 0.0
  %443 = vmatmul.mubr.f32.gmra.mxu0 %v173
  %v444 = vpop.f32.mrf.mxu0
  %v445 = vadd.f32 %v148, %v444
  %v446 = vpop.f32.mrf.mxu0
  %447 = vmatprep.mubr.f32.mxu0 0.0
  %448 = vmatmul.mubr.f32.gmra.mxu0 %v176
  %v449 = vpop.f32.mrf.mxu0
  %v450 = vadd.f32 %v148, %v449
  %v451 = vpop.f32.mrf.mxu0
  %452 = vmatprep.mubr.f32.mxu0 0.0
  %453 = vmatmul.mubr.f32.gmra.mxu0 %v179
  %v454 = vpop.f32.mrf.mxu0
  %v455 = vadd.f32 %v148, %v454
  %v456 = vpop.f32.mrf.mxu0
  %457 = vmatprep.mubr.f32.mxu0 0.0
  %458 = vmatmul.mubr.f32.gmra.mxu0 %v182
  %v459 = vpop.f32.mrf.mxu0
  %v460 = vadd.f32 %v148, %v459
  %v461 = vpop.f32.mrf.mxu0
  %462 = vmatprep.mubr.f32.mxu0 0.0
  %463 = vmatmul.mubr.f32.gmra.mxu0 %v185
  %v464 = vpop.f32.mrf.mxu0
  %v465 = vadd.f32 %v148, %v464
  %v466 = vpop.f32.mrf.mxu0
  %467 = vmatprep.mubr.f32.mxu0 0.0
  %468 = vmatmul.mubr.f32.gmra.mxu0 %v188
  %v469 = vpop.f32.mrf.mxu0
  %v470 = vadd.f32 %v148, %v469
  %v471 = vpop.f32.mrf.mxu0
  %472 = vmatprep.mubr.f32.mxu0 0.0
  %473 = vmatmul.mubr.f32.gmra.mxu0 %v191
  %v474 = vpop.f32.mrf.mxu0
  %v475 = vadd.f32 %v148, %v474
  %v476 = vpop.f32.mrf.mxu0
  %477 = vmatprep.mubr.f32.mxu0 0.0
  %478 = vmatmul.mubr.f32.gmra.mxu0 %v194
  %v479 = vpop.f32.mrf.mxu0
  %v480 = vadd.f32 %v148, %v479
  %v481 = vpop.f32.mrf.mxu0
  %482 = vmatprep.mubr.f32.mxu0 0.0
  %483 = vmatmul.mubr.f32.gmra.mxu0 %v197
  %v484 = vpop.f32.mrf.mxu0
  %v485 = vadd.f32 %v148, %v484
  %v486 = vpop.f32.mrf.mxu0
  %487 = vmatprep.mubr.f32.mxu0 0.0
  %488 = vmatmul.mubr.f32.gmra.mxu0 %v200
  %v489 = vpop.f32.mrf.mxu0
  %v490 = vadd.f32 %v148, %v489
  %v491 = vpop.f32.mrf.mxu0
  %492 = vmatprep.mubr.f32.mxu0 0.0
  %493 = vmatmul.mubr.f32.gmra.mxu0 %v203
  %v494 = vpop.f32.mrf.mxu0
  %v495 = vadd.f32 %v148, %v494
  %v496 = vpop.f32.mrf.mxu0
  %497 = vmatprep.mubr.f32.mxu0 0.0
  %498 = vmatmul.mubr.f32.gmra.mxu0 %v206
  %v499 = vpop.f32.mrf.mxu0
  %v500 = vadd.f32 %v148, %v499
  %v501 = vpop.f32.mrf.mxu0
  %502 = vmatprep.mubr.f32.mxu0 0.0
  %503 = vmatmul.mubr.f32.gmra.mxu0 %v209
  %v504 = vpop.f32.mrf.mxu0
  %v505 = vadd.f32 %v148, %v504
  %v506 = vpop.f32.mrf.mxu0
  %507 = vmatprep.mubr.f32.mxu0 0.0
  %508 = vmatmul.mubr.f32.gmra.mxu0 %v212
  %v509 = vpop.f32.mrf.mxu0
  %v510 = vadd.f32 %v148, %v509
  %v511 = vpop.f32.mrf.mxu0
  %512 = vmatprep.mubr.f32.mxu0 0.0
  %513 = vmatmul.mubr.f32.gmra.mxu0 %v215
  %v514 = vpop.f32.mrf.mxu0
  %v515 = vadd.f32 %v148, %v514
  %v516 = vpop.f32.mrf.mxu0
  %517 = vmatprep.mubr.f32.mxu0 0.0
  %518 = vmatmul.mubr.f32.gmra.mxu0 %v218
  %v519 = vpop.f32.mrf.mxu0
  %v520 = vadd.f32 %v148, %v519
  %v521 = vpop.f32.mrf.mxu0
  %522 = vmatprep.mubr.f32.mxu0 0.0
  %523 = vmatmul.mubr.f32.gmra.mxu0 %v221
  %v524 = vpop.f32.mrf.mxu0
  %v525 = vadd.f32 %v148, %v524
  %v526 = vpop.f32.mrf.mxu0
  %527 = vmatprep.mubr.f32.mxu0 0.0
  %528 = vmatmul.mubr.f32.gmra.mxu0 %v224
  %v529 = vpop.f32.mrf.mxu0
  %v530 = vadd.f32 %v148, %v529
  %v531 = vpop.f32.mrf.mxu0
  %532 = vmatprep.mubr.f32.mxu0 0.0
  %533 = vmatmul.mubr.f32.gmra.mxu0 %v227
  %v534 = vpop.f32.mrf.mxu0
  %v535 = vadd.f32 %v148, %v534
  %v536 = vpop.f32.mrf.mxu0
  %537 = vmatprep.mubr.f32.mxu0 0.0
  %538 = vmatmul.mubr.f32.gmra.mxu0 %v230
  %v539 = vpop.f32.mrf.mxu0
  %v540 = vadd.f32 %v148, %v539
  %v541 = vpop.f32.mrf.mxu0
  %542 = vmatprep.mubr.f32.mxu0 0.0
  %543 = vmatmul.mubr.f32.gmra.mxu0 %v233
  %v544 = vpop.f32.mrf.mxu0
  %v545 = vadd.f32 %v148, %v544
  %v546 = vpop.f32.mrf.mxu0
  %547 = vmatprep.mubr.f32.mxu0 0.0
  %548 = vmatmul.mubr.f32.gmra.mxu0 %v236
  %v549 = vpop.f32.mrf.mxu0
  %v550 = vadd.f32 %v148, %v549
  %v551 = vpop.f32.mrf.mxu0
  %552 = vmatprep.mubr.f32.mxu0 0.0
  %553 = vmatmul.mubr.f32.gmra.mxu0 %v239
  %v554 = vpop.f32.mrf.mxu0
  %v555 = vadd.f32 %v148, %v554
  %v556 = vpop.f32.mrf.mxu0
  %557 = vmatprep.mubr.f32.mxu0 0.0
  %558 = vmatmul.mubr.f32.gmra.mxu0 %v242
  %v559 = vpop.f32.mrf.mxu0
  %v560 = vadd.f32 %v148, %v559
  %v561 = vpop.f32.mrf.mxu0
  %562 = vmatprep.mubr.f32.mxu0 0.0
  %563 = vmatmul.mubr.f32.gmra.mxu0 %v245
  %v564 = vpop.f32.mrf.mxu0
  %v565 = vadd.f32 %v148, %v564
  %v566 = vpop.f32.mrf.mxu0
  %567 = vmatprep.mubr.f32.mxu0 0.0
  %568 = vmatmul.mubr.f32.gmra.mxu0 %v248
  %v569 = vpop.f32.mrf.mxu0
  %v570 = vadd.f32 %v148, %v569
  %v571 = vpop.f32.mrf.mxu0
  %572 = vmatprep.mubr.f32.mxu0 0.0
  %573 = vmatmul.mubr.f32.gmra.mxu0 %v251
  %v574 = vpop.f32.mrf.mxu0
  %v575 = vadd.f32 %v148, %v574
  %v576 = vpop.f32.mrf.mxu0
  %577 = vmatprep.mubr.f32.mxu0 0.0
  %578 = vmatmul.mubr.f32.gmra.mxu0 %v254
  %v579 = vpop.f32.mrf.mxu0
  %v580 = vadd.f32 %v148, %v579
  %v581 = vpop.f32.mrf.mxu0
  %582 = vmatprep.mubr.f32.mxu0 0.0
  %583 = vmatmul.mubr.f32.gmra.mxu0 %v257
  %v584 = vpop.f32.mrf.mxu0
  %v585 = vadd.f32 %v148, %v584
  %v586 = vpop.f32.mrf.mxu0
  %587 = vmatprep.mubr.f32.mxu0 0.0
  %588 = vmatmul.mubr.f32.gmra.mxu0 %v260
  %v589 = vpop.f32.mrf.mxu0
  %v590 = vadd.f32 %v148, %v589
  %v591 = vpop.f32.mrf.mxu0
  %592 = vmatprep.mubr.f32.mxu0 0.0
  %593 = vmatmul.mubr.f32.gmra.mxu0 %v263
  %v594 = vpop.f32.mrf.mxu0
  %v595 = vadd.f32 %v148, %v594
  %v596 = vpop.f32.mrf.mxu0
  %597 = vmatprep.mubr.f32.mxu0 0.0
  %598 = vmatmul.mubr.f32.gmra.mxu0 %v266
  %v599 = vpop.f32.mrf.mxu0
  %v600 = vadd.f32 %v148, %v599
  %v601 = vpop.f32.mrf.mxu0
  %602 = vmatprep.mubr.f32.mxu0 0.0
  %603 = vmatmul.mubr.f32.gmra.mxu0 %v269
  %v604 = vpop.f32.mrf.mxu0
  %v605 = vadd.f32 %v148, %v604
  %v606 = vpop.f32.mrf.mxu0
  %607 = vmatprep.mubr.f32.mxu0 0.0
  %608 = vmatmul.mubr.f32.gmra.mxu0 %v272
  %v609 = vpop.f32.mrf.mxu0
  %v610 = vadd.f32 %v148, %v609
  %v611 = vpop.f32.mrf.mxu0
  %612 = vmatprep.mubr.f32.mxu0 0.0
  %613 = vmatmul.mubr.f32.gmra.mxu0 %v275
  %v614 = vpop.f32.mrf.mxu0
  %v615 = vadd.f32 %v148, %v614
  %v616 = vpop.f32.mrf.mxu0
  %617 = vmatprep.mubr.f32.mxu0 0.0
  %618 = vmatmul.mubr.f32.gmra.mxu0 %v278
  %v619 = vpop.f32.mrf.mxu0
  %v620 = vadd.f32 %v148, %v619
  %v621 = vpop.f32.mrf.mxu0
  %622 = vmatprep.mubr.f32.mxu0 0.0
  %623 = vmatmul.mubr.f32.gmra.mxu0 %v281
  %v624 = vpop.f32.mrf.mxu0
  %v625 = vadd.f32 %v148, %v624
  %v626 = vpop.f32.mrf.mxu0
  %627 = vmatprep.mubr.f32.mxu0 0.0
  %628 = vmatmul.mubr.f32.gmra.mxu0 %v284
  %v629 = vpop.f32.mrf.mxu0
  %v630 = vadd.f32 %v148, %v629
  %v631 = vpop.f32.mrf.mxu0
  %632 = vmatprep.mubr.f32.mxu0 0.0
  %633 = vmatmul.mubr.f32.gmra.mxu0 %v287
  %v634 = vpop.f32.mrf.mxu0
  %v635 = vadd.f32 %v148, %v634
  %v636 = vpop.f32.mrf.mxu0
  %637 = vmatprep.mubr.f32.mxu0 0.0
  %638 = vmatmul.mubr.f32.gmra.mxu0 %v290
  %v639 = vpop.f32.mrf.mxu0
  %v640 = vadd.f32 %v148, %v639
  %v641 = vpop.f32.mrf.mxu0
  %642 = vmatprep.mubr.f32.mxu0 0.0
  %643 = vmatmul.mubr.f32.gmra.mxu0 %v293
  %v644 = vpop.f32.mrf.mxu0
  %v645 = vadd.f32 %v148, %v644
  %v646 = vpop.f32.mrf.mxu0
  %647 = vmatprep.mubr.f32.mxu0 0.0
  %648 = vmatmul.mubr.f32.gmra.mxu0 %v296
  %v649 = vpop.f32.mrf.mxu0
  %v650 = vadd.f32 %v148, %v649
  %v651 = vpop.f32.mrf.mxu0
  %652 = vmatprep.mubr.f32.mxu0 0.0
  %653 = vmatmul.mubr.f32.gmra.mxu0 %v299
  %v654 = vpop.f32.mrf.mxu0
  %v655 = vadd.f32 %v148, %v654
  %v656 = vpop.f32.mrf.mxu0
  %657 = vmatprep.mubr.f32.mxu0 0.0
  %658 = vmatmul.mubr.f32.gmra.mxu0 %v302
  %v659 = vpop.f32.mrf.mxu0
  %v660 = vadd.f32 %v148, %v659
  %v661 = vpop.f32.mrf.mxu0
  %662 = vmatprep.mubr.f32.mxu0 0.0
  %663 = vmatmul.mubr.f32.gmra.mxu0 %v305
  %v664 = vpop.f32.mrf.mxu0
  %v665 = vadd.f32 %v148, %v664
  %v666 = vpop.f32.mrf.mxu0
  %667 = vmatprep.mubr.f32.mxu0 0.0
  %668 = vmatmul.mubr.f32.gmra.mxu0 %v308
  %v669 = vpop.f32.mrf.mxu0
  %v670 = vadd.f32 %v148, %v669
  %v671 = vpop.f32.mrf.mxu0
  %672 = vmatprep.mubr.f32.mxu0 0.0
  %673 = vmatmul.mubr.f32.gmra.mxu0 %v311
  %v674 = vpop.f32.mrf.mxu0
  %v675 = vadd.f32 %v148, %v674
  %v676 = vpop.f32.mrf.mxu0
  %677 = vmatprep.mubr.f32.mxu0 0.0
  %678 = vmatmul.mubr.f32.gmra.mxu0 %v314
  %v679 = vpop.f32.mrf.mxu0
  %v680 = vadd.f32 %v148, %v679
  %v681 = vpop.f32.mrf.mxu0
  %682 = vmatprep.mubr.f32.mxu0 0.0
  %683 = vmatmul.mubr.f32.gmra.mxu0 %v317
  %v684 = vpop.f32.mrf.mxu0
  %v685 = vadd.f32 %v148, %v684
  %v686 = vpop.f32.mrf.mxu0
  %687 = vmatprep.mubr.f32.mxu0 0.0
  %688 = vmatmul.mubr.f32.gmra.mxu0 %v320
  %v689 = vpop.f32.mrf.mxu0
  %v690 = vadd.f32 %v148, %v689
  %v691 = vpop.f32.mrf.mxu0
  %692 = vmatprep.mubr.f32.mxu0 0.0
  %693 = vmatmul.mubr.f32.gmra.mxu0 %v323
  %v694 = vpop.f32.mrf.mxu0
  %v695 = vadd.f32 %v148, %v694
  %v696 = vpop.f32.mrf.mxu0
  %697 = vmatprep.mubr.f32.mxu0 0.0
  %698 = vmatmul.mubr.f32.gmra.mxu0 %v326
  %v699 = vpop.f32.mrf.mxu0
  %v700 = vadd.f32 %v148, %v699
  %v701 = vpop.f32.mrf.mxu0
  %702 = vmatprep.mubr.f32.mxu0 0.0
  %703 = vmatmul.mubr.f32.gmra.mxu0 %v329
  %v704 = vpop.f32.mrf.mxu0
  %v705 = vadd.f32 %v148, %v704
  %v706 = vpop.f32.mrf.mxu0
  %707 = vmatprep.mubr.f32.mxu0 0.0
  %708 = vmatmul.mubr.f32.gmra.mxu0 %v332
  %v709 = vpop.f32.mrf.mxu0
  %v710 = vadd.f32 %v148, %v709
  %v711 = vpop.f32.mrf.mxu0
  %712 = vmatprep.mubr.f32.mxu0 0.0
  %713 = vmatmul.mubr.f32.gmra.mxu0 %v335
  %v714 = vpop.f32.mrf.mxu0
  %v715 = vadd.f32 %v148, %v714
  %v716 = vpop.f32.mrf.mxu0
  %717 = vmatprep.mubr.f32.mxu0 0.0
  %718 = vmatmul.mubr.f32.gmra.mxu0 %v338
  %v719 = vpop.f32.mrf.mxu0
  %v720 = vadd.f32 %v148, %v719
  %v721 = vpop.f32.mrf.mxu0
  %722 = vmatprep.mubr.f32.mxu0 0.0
  %723 = vmatmul.mubr.f32.gmra.mxu0 %v341
  %v724 = vpop.f32.mrf.mxu0
  %v725 = vadd.f32 %v148, %v724
  %v726 = vpop.f32.mrf.mxu0
  %727 = vdwg.mxu0
  %v728 = vrsqrt.pop %v410
  %v729 = vrsqrt.pop %v415
  %v730 = vrsqrt.pop %v420
  %v731 = vrsqrt.pop %v425
  %v732 = vrsqrt.pop %v430
  %v733 = vrsqrt.pop %v435
  %v734 = vrsqrt.pop %v440
  %v735 = vrsqrt.pop %v445
  %v736 = vrsqrt.pop %v450
  %v737 = vrsqrt.pop %v455
  %v738 = vrsqrt.pop %v460
  %v739 = vrsqrt.pop %v465
  %v740 = vrsqrt.pop %v470
  %v741 = vrsqrt.pop %v475
  %v742 = vrsqrt.pop %v480
  %v743 = vrsqrt.pop %v485
  %v744 = vrsqrt.pop %v490
  %v745 = vrsqrt.pop %v495
  %v746 = vrsqrt.pop %v500
  %v747 = vrsqrt.pop %v505
  %v748 = vrsqrt.pop %v510
  %v749 = vrsqrt.pop %v515
  %v750 = vrsqrt.pop %v520
  %v751 = vrsqrt.pop %v525
  %v752 = vrsqrt.pop %v530
  %v753 = vrsqrt.pop %v535
  %v754 = vrsqrt.pop %v540
  %v755 = vrsqrt.pop %v545
  %v756 = vrsqrt.pop %v550
  %v757 = vrsqrt.pop %v555
  %v758 = vrsqrt.pop %v560
  %v759 = vrsqrt.pop %v565
  %v760 = vrsqrt.pop %v570
  %v761 = vrsqrt.pop %v575
  %v762 = vrsqrt.pop %v580
  %v763 = vrsqrt.pop %v585
  %v764 = vrsqrt.pop %v590
  %v765 = vrsqrt.pop %v595
  %v766 = vrsqrt.pop %v600
  %v767 = vrsqrt.pop %v605
  %v768 = vrsqrt.pop %v610
  %v769 = vrsqrt.pop %v615
  %v770 = vrsqrt.pop %v620
  %v771 = vrsqrt.pop %v625
  %v772 = vrsqrt.pop %v630
  %v773 = vrsqrt.pop %v635
  %v774 = vrsqrt.pop %v640
  %v775 = vrsqrt.pop %v645
  %v776 = vrsqrt.pop %v650
  %v777 = vrsqrt.pop %v655
  %v778 = vrsqrt.pop %v660
  %v779 = vrsqrt.pop %v665
  %v780 = vrsqrt.pop %v670
  %v781 = vrsqrt.pop %v675
  %v782 = vrsqrt.pop %v680
  %v783 = vrsqrt.pop %v685
  %v784 = vrsqrt.pop %v690
  %v785 = vrsqrt.pop %v695
  %v786 = vrsqrt.pop %v700
  %v787 = vrsqrt.pop %v705
  %v788 = vrsqrt.pop %v710
  %v789 = vrsqrt.pop %v715
  %v790 = vrsqrt.pop %v720
  %v791 = vrsqrt.pop %v725
  %v792 = vmul.f32 %v14, %v728
  %v793 = vmul.f32 %v15, %v729
  %v794 = vmul.f32 %v16, %v730
  %v795 = vmul.f32 %v17, %v731
  %v796 = vmul.f32 %v18, %v732
  %v797 = vmul.f32 %v19, %v733
  %v798 = vmul.f32 %v20, %v734
  %v799 = vmul.f32 %v21, %v735
  %v800 = vmul.f32 %v22, %v736
  %v801 = vmul.f32 %v23, %v737
  %v802 = vmul.f32 %v24, %v738
  %v803 = vmul.f32 %v25, %v739
  %v804 = vmul.f32 %v26, %v740
  %v805 = vmul.f32 %v27, %v741
  %v806 = vmul.f32 %v28, %v742
  %v807 = vmul.f32 %v29, %v743
  %v808 = vmul.f32 %v30, %v744
  %v809 = vmul.f32 %v31, %v745
  %v810 = vmul.f32 %v32, %v746
  %v811 = vmul.f32 %v33, %v747
  %v812 = vmul.f32 %v34, %v748
  %v813 = vmul.f32 %v35, %v749
  %v814 = vmul.f32 %v36, %v750
  %v815 = vmul.f32 %v37, %v751
  %v816 = vmul.f32 %v38, %v752
  %v817 = vmul.f32 %v39, %v753
  %v818 = vmul.f32 %v40, %v754
  %v819 = vmul.f32 %v41, %v755
  %v820 = vmul.f32 %v42, %v756
  %v821 = vmul.f32 %v43, %v757
  %v822 = vmul.f32 %v44, %v758
  %v823 = vmul.f32 %v45, %v759
  %v824 = vmul.f32 %v46, %v760
  %v825 = vmul.f32 %v47, %v761
  %v826 = vmul.f32 %v48, %v762
  %v827 = vmul.f32 %v49, %v763
  %v828 = vmul.f32 %v50, %v764
  %v829 = vmul.f32 %v51, %v765
  %v830 = vmul.f32 %v52, %v766
  %v831 = vmul.f32 %v53, %v767
  %v832 = vmul.f32 %v54, %v768
  %v833 = vmul.f32 %v55, %v769
  %v834 = vmul.f32 %v56, %v770
  %v835 = vmul.f32 %v57, %v771
  %v836 = vmul.f32 %v58, %v772
  %v837 = vmul.f32 %v59, %v773
  %v838 = vmul.f32 %v60, %v774
  %v839 = vmul.f32 %v61, %v775
  %v840 = vmul.f32 %v62, %v776
  %v841 = vmul.f32 %v63, %v777
  %v842 = vmul.f32 %v64, %v778
  %v843 = vmul.f32 %v65, %v779
  %v844 = vmul.f32 %v66, %v780
  %v845 = vmul.f32 %v67, %v781
  %v846 = vmul.f32 %v68, %v782
  %v847 = vmul.f32 %v69, %v783
  %v848 = vmul.f32 %v70, %v784
  %v849 = vmul.f32 %v71, %v785
  %v850 = vmul.f32 %v72, %v786
  %v851 = vmul.f32 %v73, %v787
  %v852 = vmul.f32 %v74, %v788
  %v853 = vmul.f32 %v75, %v789
  %v854 = vmul.f32 %v76, %v790
  %v855 = vmul.f32 %v77, %v791
  %856 = vst.msk [vmem:[%s3] sm:$0xff] %vm150, %v792
  %857 = vst.msk [vmem:[%s3 + $0x8] sm:$0xff] %vm150, %v793
  %858 = vst.msk [vmem:[%s3 + $0x10] sm:$0xff] %vm150, %v794
  %859 = vst.msk [vmem:[%s3 + $0x18] sm:$0xff] %vm150, %v795
  %860 = vst.msk [vmem:[%s3 + $0x20] sm:$0xff] %vm150, %v796
  %861 = vst.msk [vmem:[%s3 + $0x28] sm:$0xff] %vm150, %v797
  %862 = vst.msk [vmem:[%s3 + $0x30] sm:$0xff] %vm150, %v798
  %863 = vst.msk [vmem:[%s3 + $0x38] sm:$0xff] %vm150, %v799
  %864 = vst.msk [vmem:[%s3 + $0x40] sm:$0xff] %vm150, %v800
  %865 = vst.msk [vmem:[%s3 + $0x48] sm:$0xff] %vm150, %v801
  %866 = vst.msk [vmem:[%s3 + $0x50] sm:$0xff] %vm150, %v802
  %867 = vst.msk [vmem:[%s3 + $0x58] sm:$0xff] %vm150, %v803
  %868 = vst.msk [vmem:[%s3 + $0x60] sm:$0xff] %vm150, %v804
  %869 = vst.msk [vmem:[%s3 + $0x68] sm:$0xff] %vm150, %v805
  %870 = vst.msk [vmem:[%s3 + $0x70] sm:$0xff] %vm150, %v806
  %871 = vst.msk [vmem:[%s3 + $0x78] sm:$0xff] %vm150, %v807
  %872 = vst.msk [vmem:[%s3 + $0x80] sm:$0xff] %vm150, %v808
  %873 = vst.msk [vmem:[%s3 + $0x88] sm:$0xff] %vm150, %v809
  %874 = vst.msk [vmem:[%s3 + $0x90] sm:$0xff] %vm150, %v810
  %875 = vst.msk [vmem:[%s3 + $0x98] sm:$0xff] %vm150, %v811
  %876 = vst.msk [vmem:[%s3 + $0xa0] sm:$0xff] %vm150, %v812
  %877 = vst.msk [vmem:[%s3 + $0xa8] sm:$0xff] %vm150, %v813
  %878 = vst.msk [vmem:[%s3 + $0xb0] sm:$0xff] %vm150, %v814
  %879 = vst.msk [vmem:[%s3 + $0xb8] sm:$0xff] %vm150, %v815
  %880 = vst.msk [vmem:[%s3 + $0xc0] sm:$0xff] %vm150, %v816
  %881 = vst.msk [vmem:[%s3 + $0xc8] sm:$0xff] %vm150, %v817
  %882 = vst.msk [vmem:[%s3 + $0xd0] sm:$0xff] %vm150, %v818
  %883 = vst.msk [vmem:[%s3 + $0xd8] sm:$0xff] %vm150, %v819
  %884 = vst.msk [vmem:[%s3 + $0xe0] sm:$0xff] %vm150, %v820
  %885 = vst.msk [vmem:[%s3 + $0xe8] sm:$0xff] %vm150, %v821
  %886 = vst.msk [vmem:[%s3 + $0xf0] sm:$0xff] %vm150, %v822
  %887 = vst.msk [vmem:[%s3 + $0xf8] sm:$0xff] %vm150, %v823
  %888 = vst.msk [vmem:[%s3 + $0x100] sm:$0xff] %vm150, %v824
  %889 = vst.msk [vmem:[%s3 + $0x108] sm:$0xff] %vm150, %v825
  %890 = vst.msk [vmem:[%s3 + $0x110] sm:$0xff] %vm150, %v826
  %891 = vst.msk [vmem:[%s3 + $0x118] sm:$0xff] %vm150, %v827
  %892 = vst.msk [vmem:[%s3 + $0x120] sm:$0xff] %vm150, %v828
  %893 = vst.msk [vmem:[%s3 + $0x128] sm:$0xff] %vm150, %v829
  %894 = vst.msk [vmem:[%s3 + $0x130] sm:$0xff] %vm150, %v830
  %895 = vst.msk [vmem:[%s3 + $0x138] sm:$0xff] %vm150, %v831
  %896 = vst.msk [vmem:[%s3 + $0x140] sm:$0xff] %vm150, %v832
  %897 = vst.msk [vmem:[%s3 + $0x148] sm:$0xff] %vm150, %v833
  %898 = vst.msk [vmem:[%s3 + $0x150] sm:$0xff] %vm150, %v834
  %899 = vst.msk [vmem:[%s3 + $0x158] sm:$0xff] %vm150, %v835
  %900 = vst.msk [vmem:[%s3 + $0x160] sm:$0xff] %vm150, %v836
  %901 = vst.msk [vmem:[%s3 + $0x168] sm:$0xff] %vm150, %v837
  %902 = vst.msk [vmem:[%s3 + $0x170] sm:$0xff] %vm150, %v838
  %903 = vst.msk [vmem:[%s3 + $0x178] sm:$0xff] %vm150, %v839
  %904 = vst.msk [vmem:[%s3 + $0x180] sm:$0xff] %vm150, %v840
  %905 = vst.msk [vmem:[%s3 + $0x188] sm:$0xff] %vm150, %v841
  %906 = vst.msk [vmem:[%s3 + $0x190] sm:$0xff] %vm150, %v842
  %907 = vst.msk [vmem:[%s3 + $0x198] sm:$0xff] %vm150, %v843
  %908 = vst.msk [vmem:[%s3 + $0x1a0] sm:$0xff] %vm150, %v844
  %909 = vst.msk [vmem:[%s3 + $0x1a8] sm:$0xff] %vm150, %v845
  %910 = vst.msk [vmem:[%s3 + $0x1b0] sm:$0xff] %vm150, %v846
  %911 = vst.msk [vmem:[%s3 + $0x1b8] sm:$0xff] %vm150, %v847
  %912 = vst.msk [vmem:[%s3 + $0x1c0] sm:$0xff] %vm150, %v848
  %913 = vst.msk [vmem:[%s3 + $0x1c8] sm:$0xff] %vm150, %v849
  %914 = vst.msk [vmem:[%s3 + $0x1d0] sm:$0xff] %vm150, %v850
  %915 = vst.msk [vmem:[%s3 + $0x1d8] sm:$0xff] %vm150, %v851
  %916 = vst.msk [vmem:[%s3 + $0x1e0] sm:$0xff] %vm150, %v852
  %917 = vst.msk [vmem:[%s3 + $0x1e8] sm:$0xff] %vm150, %v853
  %918 = vst.msk [vmem:[%s3 + $0x1f0] sm:$0xff] %vm150, %v854
  %919 = vst.msk [vmem:[%s3 + $0x1f8] sm:$0xff] %vm150, %v855
  // Predicated region
  $region14: #{encoder_forward.8} parent=0 // pred_check
    _
  $region15: #{encoder_forward.8} parent=0 // pred_check_branch
    %921 = sbr.rel (0) target = $region17
  $region16: #{encoder_forward.8} parent=0 // pred_region
    _
  $region17: #{encoder_forward.8} parent=0 // pred_fallthru
    _
  // Predicated region
  $region18: #{encoder_forward.8} parent=0 // pred_check
    _
  $region19: #{encoder_forward.8} parent=0 // pred_check_branch
    %923 = sbr.rel (0) target = $region21
  $region20: #{encoder_forward.8} parent=0 // pred_region
    _
  $region21: #{encoder_forward.8} parent=0 // pred_fallthru
    _

// kernel: encoder_forward.9
$region0: #{encoder_forward.9}
  #allocation0 [shape = 'u32[]', space=smem, size = 0x4, offset = 0x4, fixed_abs, tag = 'smem constant byte address 0x4 - core index']
  #allocation1 [shape = 'u32[144,128]{1,0:T(1,128)}', space=vmem, size = 0x12000, scoped, tag = 'internal scratch']
  %s0 = inlined_call_operand.vmem [shape: f32[128,256], index: 0, kind: input, shape index: {}]
  %s1 = inlined_call_operand.vmem [shape: f32[256,8], index: 1, kind: input, shape index: {}]
  %s2 = inlined_call_operand.vmem [shape: f32[1,8], index: 2, kind: input, shape index: {}]
  %s3 = inlined_call_operand.vmem [shape: f32[128,8], index: 3, kind: output, shape index: {}]
  %s4 = sld [smem:[#allocation0]]
  $region22: #{encoder_forward.9} parent=0
    _
  %s6 = ssub.s32 1, %s4
  %s7 = scalar_select 0, %s6, %s4
  // Predicated region
  $region2: #{encoder_forward.9} parent=0 // pred_check
    _
  $region3: #{encoder_forward.9} parent=0 // pred_check_branch
    %9 = sbr.rel (0) target = $region5
  $region4: #{encoder_forward.9} parent=0 // pred_region
    _
  $region5: #{encoder_forward.9} parent=0 // pred_fallthru
    _
  // Predicated region
  $region6: #{encoder_forward.9} parent=0 // pred_check
    _
  $region7: #{encoder_forward.9} parent=0 // pred_check_branch
    %11 = sbr.rel (0) target = $region9
  $region8: #{encoder_forward.9} parent=0 // pred_region
    _
  $region9: #{encoder_forward.9} parent=0 // pred_fallthru
    _
  // Predicated region
  $region10: #{encoder_forward.9} parent=0 // pred_check
    _
  $region11: #{encoder_forward.9} parent=0 // pred_check_branch
    %13 = sbr.rel (0) target = $region13
  $region12: #{encoder_forward.9} parent=0 // pred_region
    _
  $region13: #{encoder_forward.9} parent=0 // pred_fallthru
    _
  %v14 = vld [vmem:[%s0] sm:$0xff]
  %v15 = vld [vmem:[%s0 + $0x8] sm:$0xff]
  %v16 = vld [vmem:[%s0 + $0x10] sm:$0xff]
  %v17 = vld [vmem:[%s0 + $0x18] sm:$0xff]
  %v18 = vld [vmem:[%s0 + $0x20] sm:$0xff]
  %v19 = vld [vmem:[%s0 + $0x28] sm:$0xff]
  %v20 = vld [vmem:[%s0 + $0x30] sm:$0xff]
  %v21 = vld [vmem:[%s0 + $0x38] sm:$0xff]
  %v22 = vld [vmem:[%s0 + $0x40] sm:$0xff]
  %v23 = vld [vmem:[%s0 + $0x48] sm:$0xff]
  %v24 = vld [vmem:[%s0 + $0x50] sm:$0xff]
  %v25 = vld [vmem:[%s0 + $0x58] sm:$0xff]
  %v26 = vld [vmem:[%s0 + $0x60] sm:$0xff]
  %v27 = vld [vmem:[%s0 + $0x68] sm:$0xff]
  %v28 = vld [vmem:[%s0 + $0x70] sm:$0xff]
  %v29 = vld [vmem:[%s0 + $0x78] sm:$0xff]
  %v30 = vld [vmem:[%s0 + $0x80] sm:$0xff]
  %v31 = vld [vmem:[%s0 + $0x88] sm:$0xff]
  %v32 = vld [vmem:[%s0 + $0x90] sm:$0xff]
  %v33 = vld [vmem:[%s0 + $0x98] sm:$0xff]
  %v34 = vld [vmem:[%s0 + $0xa0] sm:$0xff]
  %v35 = vld [vmem:[%s0 + $0xa8] sm:$0xff]
  %v36 = vld [vmem:[%s0 + $0xb0] sm:$0xff]
  %v37 = vld [vmem:[%s0 + $0xb8] sm:$0xff]
  %v38 = vld [vmem:[%s0 + $0xc0] sm:$0xff]
  %v39 = vld [vmem:[%s0 + $0xc8] sm:$0xff]
  %v40 = vld [vmem:[%s0 + $0xd0] sm:$0xff]
  %v41 = vld [vmem:[%s0 + $0xd8] sm:$0xff]
  %v42 = vld [vmem:[%s0 + $0xe0] sm:$0xff]
  %v43 = vld [vmem:[%s0 + $0xe8] sm:$0xff]
  %v44 = vld [vmem:[%s0 + $0xf0] sm:$0xff]
  %v45 = vld [vmem:[%s0 + $0xf8] sm:$0xff]
  %v46 = vld [vmem:[%s1] sm:$0xff]
  %v47 = vld [vmem:[%s1 + $0x8] sm:$0xff]
  %v48 = vld [vmem:[%s1 + $0x10] sm:$0xff]
  %v49 = vld [vmem:[%s1 + $0x18] sm:$0xff]
  %v50 = vld [vmem:[%s1 + $0x20] sm:$0xff]
  %v51 = vld [vmem:[%s1 + $0x28] sm:$0xff]
  %v52 = vld [vmem:[%s1 + $0x30] sm:$0xff]
  %v53 = vld [vmem:[%s1 + $0x38] sm:$0xff]
  %v54 = vld [vmem:[%s1 + $0x40] sm:$0xff]
  %v55 = vld [vmem:[%s1 + $0x48] sm:$0xff]
  %v56 = vld [vmem:[%s1 + $0x50] sm:$0xff]
  %v57 = vld [vmem:[%s1 + $0x58] sm:$0xff]
  %v58 = vld [vmem:[%s1 + $0x60] sm:$0xff]
  %v59 = vld [vmem:[%s1 + $0x68] sm:$0xff]
  %v60 = vld [vmem:[%s1 + $0x70] sm:$0xff]
  %v61 = vld [vmem:[%s1 + $0x78] sm:$0xff]
  %v62 = vld [vmem:[%s1 + $0x80] sm:$0xff]
  %v63 = vld [vmem:[%s1 + $0x88] sm:$0xff]
  %v64 = vld [vmem:[%s1 + $0x90] sm:$0xff]
  %v65 = vld [vmem:[%s1 + $0x98] sm:$0xff]
  %v66 = vld [vmem:[%s1 + $0xa0] sm:$0xff]
  %v67 = vld [vmem:[%s1 + $0xa8] sm:$0xff]
  %v68 = vld [vmem:[%s1 + $0xb0] sm:$0xff]
  %v69 = vld [vmem:[%s1 + $0xb8] sm:$0xff]
  %v70 = vld [vmem:[%s1 + $0xc0] sm:$0xff]
  %v71 = vld [vmem:[%s1 + $0xc8] sm:$0xff]
  %v72 = vld [vmem:[%s1 + $0xd0] sm:$0xff]
  %v73 = vld [vmem:[%s1 + $0xd8] sm:$0xff]
  %v74 = vld [vmem:[%s1 + $0xe0] sm:$0xff]
  %v75 = vld [vmem:[%s1 + $0xe8] sm:$0xff]
  %v76 = vld [vmem:[%s1 + $0xf0] sm:$0xff]
  %v77 = vld [vmem:[%s1 + $0xf8] sm:$0xff]
  %v78 = vld [vmem:[%s2] sm:$0x1]
  %v80 = vlaneseq
  %v81 = vshrl.u32 %v80, 7
  %v82 = vsub.s32 0, %v81
  %v83 = vrot.slane %v78, %v82
  %85 = vmatprep.subr.mxu0 0.0
  %86 = vmatpush1.msra.mxu0 %v61
  %87 = vmatprep.subr.mxu0 0.0
  %88 = vmatpush1.msra.mxu0 %v60
  %89 = vmatprep.subr.mxu0 0.0
  %90 = vmatpush1.msra.mxu0 %v59
  %91 = vmatprep.subr.mxu0 0.0
  %92 = vmatpush1.msra.mxu0 %v58
  %93 = vmatprep.subr.mxu0 0.0
  %94 = vmatpush1.msra.mxu0 %v57
  %95 = vmatprep.subr.mxu0 0.0
  %96 = vmatpush1.msra.mxu0 %v56
  %97 = vmatprep.subr.mxu0 0.0
  %98 = vmatpush1.msra.mxu0 %v55
  %99 = vmatprep.subr.mxu0 0.0
  %100 = vmatpush1.msra.mxu0 %v54
  %101 = vmatprep.subr.mxu0 0.0
  %102 = vmatpush1.msra.mxu0 %v53
  %103 = vmatprep.subr.mxu0 0.0
  %104 = vmatpush1.msra.mxu0 %v52
  %105 = vmatprep.subr.mxu0 0.0
  %106 = vmatpush1.msra.mxu0 %v51
  %107 = vmatprep.subr.mxu0 0.0
  %108 = vmatpush1.msra.mxu0 %v50
  %109 = vmatprep.subr.mxu0 0.0
  %110 = vmatpush1.msra.mxu0 %v49
  %111 = vmatprep.subr.mxu0 0.0
  %112 = vmatpush1.msra.mxu0 %v48
  %113 = vmatprep.subr.mxu0 0.0
  %114 = vmatpush1.msra.mxu0 %v47
  %115 = vmatprep.subr.mxu0 0.0
  %116 = vmatpush1.msra.mxu0 %v46
  %117 = vmatprep.subr.mxu0 0.0
  %118 = vmatpush2.msra.mxu0 %v77
  %119 = vmatprep.subr.mxu0 0.0
  %120 = vmatpush2.msra.mxu0 %v76
  %121 = vmatprep.subr.mxu0 0.0
  %122 = vmatpush2.msra.mxu0 %v75
  %123 = vmatprep.subr.mxu0 0.0
  %124 = vmatpush2.msra.mxu0 %v74
  %125 = vmatprep.subr.mxu0 0.0
  %126 = vmatpush2.msra.mxu0 %v73
  %127 = vmatprep.subr.mxu0 0.0
  %128 = vmatpush2.msra.mxu0 %v72
  %129 = vmatprep.subr.mxu0 0.0
  %130 = vmatpush2.msra.mxu0 %v71
  %131 = vmatprep.subr.mxu0 0.0
  %132 = vmatpush2.msra.mxu0 %v70
  %133 = vmatprep.subr.mxu0 0.0
  %134 = vmatpush2.msra.mxu0 %v69
  %135 = vmatprep.subr.mxu0 0.0
  %136 = vmatpush2.msra.mxu0 %v68
  %137 = vmatprep.subr.mxu0 0.0
  %138 = vmatpush2.msra.mxu0 %v67
  %139 = vmatprep.subr.mxu0 0.0
  %140 = vmatpush2.msra.mxu0 %v66
  %141 = vmatprep.subr.mxu0 0.0
  %142 = vmatpush2.msra.mxu0 %v65
  %143 = vmatprep.subr.mxu0 0.0
  %144 = vmatpush2.msra.mxu0 %v64
  %145 = vmatprep.subr.mxu0 0.0
  %146 = vmatpush2.msra.mxu0 %v63
  %147 = vmatprep.subr.mxu0 0.0
  %148 = vmatpush2.msra.mxu0 %v62
  %149 = vmatprep.mubr.f32.mxu0 %v15
  %150 = vmatmul.mubr.f32.gmra.mxu0 %v14
  %v151 = vpop.f32.mrf.mxu0
  %v152 = vadd.f32 %v83, %v151
  %v153 = vpop.f32.mrf.mxu0
  %154 = vmatprep.mubr.f32.mxu0 %v17
  %155 = vmatmul.mubr.f32.gmra.mxu0 %v16
  %v156 = vpop.f32.mrf.mxu0
  %v157 = vadd.f32 %v83, %v156
  %v158 = vpop.f32.mrf.mxu0
  %159 = vmatprep.mubr.f32.mxu0 %v19
  %160 = vmatmul.mubr.f32.gmra.mxu0 %v18
  %v161 = vpop.f32.mrf.mxu0
  %v162 = vadd.f32 %v83, %v161
  %v163 = vpop.f32.mrf.mxu0
  %164 = vmatprep.mubr.f32.mxu0 %v21
  %165 = vmatmul.mubr.f32.gmra.mxu0 %v20
  %v166 = vpop.f32.mrf.mxu0
  %v167 = vadd.f32 %v83, %v166
  %v168 = vpop.f32.mrf.mxu0
  %169 = vmatprep.mubr.f32.mxu0 %v23
  %170 = vmatmul.mubr.f32.gmra.mxu0 %v22
  %v171 = vpop.f32.mrf.mxu0
  %v172 = vadd.f32 %v83, %v171
  %v173 = vpop.f32.mrf.mxu0
  %174 = vmatprep.mubr.f32.mxu0 %v25
  %175 = vmatmul.mubr.f32.gmra.mxu0 %v24
  %v176 = vpop.f32.mrf.mxu0
  %v177 = vadd.f32 %v83, %v176
  %v178 = vpop.f32.mrf.mxu0
  %179 = vmatprep.mubr.f32.mxu0 %v27
  %180 = vmatmul.mubr.f32.gmra.mxu0 %v26
  %v181 = vpop.f32.mrf.mxu0
  %v182 = vadd.f32 %v83, %v181
  %v183 = vpop.f32.mrf.mxu0
  %184 = vmatprep.mubr.f32.mxu0 %v29
  %185 = vmatmul.mubr.f32.gmra.mxu0 %v28
  %v186 = vpop.f32.mrf.mxu0
  %v187 = vadd.f32 %v83, %v186
  %v188 = vpop.f32.mrf.mxu0
  %189 = vmatprep.mubr.f32.mxu0 %v31
  %190 = vmatmul.mubr.f32.gmra.mxu0 %v30
  %v191 = vpop.f32.mrf.mxu0
  %v192 = vadd.f32 %v83, %v191
  %v193 = vpop.f32.mrf.mxu0
  %194 = vmatprep.mubr.f32.mxu0 %v33
  %195 = vmatmul.mubr.f32.gmra.mxu0 %v32
  %v196 = vpop.f32.mrf.mxu0
  %v197 = vadd.f32 %v83, %v196
  %v198 = vpop.f32.mrf.mxu0
  %199 = vmatprep.mubr.f32.mxu0 %v35
  %200 = vmatmul.mubr.f32.gmra.mxu0 %v34
  %v201 = vpop.f32.mrf.mxu0
  %v202 = vadd.f32 %v83, %v201
  %v203 = vpop.f32.mrf.mxu0
  %204 = vmatprep.mubr.f32.mxu0 %v37
  %205 = vmatmul.mubr.f32.gmra.mxu0 %v36
  %v206 = vpop.f32.mrf.mxu0
  %v207 = vadd.f32 %v83, %v206
  %v208 = vpop.f32.mrf.mxu0
  %209 = vmatprep.mubr.f32.mxu0 %v39
  %210 = vmatmul.mubr.f32.gmra.mxu0 %v38
  %v211 = vpop.f32.mrf.mxu0
  %v212 = vadd.f32 %v83, %v211
  %v213 = vpop.f32.mrf.mxu0
  %214 = vmatprep.mubr.f32.mxu0 %v41
  %215 = vmatmul.mubr.f32.gmra.mxu0 %v40
  %v216 = vpop.f32.mrf.mxu0
  %v217 = vadd.f32 %v83, %v216
  %v218 = vpop.f32.mrf.mxu0
  %219 = vmatprep.mubr.f32.mxu0 %v43
  %220 = vmatmul.mubr.f32.gmra.mxu0 %v42
  %v221 = vpop.f32.mrf.mxu0
  %v222 = vadd.f32 %v83, %v221
  %v223 = vpop.f32.mrf.mxu0
  %224 = vmatprep.mubr.f32.mxu0 %v45
  %225 = vmatmul.mubr.f32.gmra.mxu0 %v44
  %v226 = vpop.f32.mrf.mxu0
  %v227 = vadd.f32 %v83, %v226
  %v228 = vpop.f32.mrf.mxu0
  %229 = vdwg.mxu0
  %vm230 = vcmask 64512
  %231 = vst.msk [vmem:[%s3] sm:$0xff] %vm230, %v152
  %232 = vst.msk [vmem:[%s3 + $0x8] sm:$0xff] %vm230, %v157
  %233 = vst.msk [vmem:[%s3 + $0x10] sm:$0xff] %vm230, %v162
  %234 = vst.msk [vmem:[%s3 + $0x18] sm:$0xff] %vm230, %v167
  %235 = vst.msk [vmem:[%s3 + $0x20] sm:$0xff] %vm230, %v172
  %236 = vst.msk [vmem:[%s3 + $0x28] sm:$0xff] %vm230, %v177
  %237 = vst.msk [vmem:[%s3 + $0x30] sm:$0xff] %vm230, %v182
  %238 = vst.msk [vmem:[%s3 + $0x38] sm:$0xff] %vm230, %v187
  %239 = vst.msk [vmem:[%s3 + $0x40] sm:$0xff] %vm230, %v192
  %240 = vst.msk [vmem:[%s3 + $0x48] sm:$0xff] %vm230, %v197
  %241 = vst.msk [vmem:[%s3 + $0x50] sm:$0xff] %vm230, %v202
  %242 = vst.msk [vmem:[%s3 + $0x58] sm:$0xff] %vm230, %v207
  %243 = vst.msk [vmem:[%s3 + $0x60] sm:$0xff] %vm230, %v212
  %244 = vst.msk [vmem:[%s3 + $0x68] sm:$0xff] %vm230, %v217
  %245 = vst.msk [vmem:[%s3 + $0x70] sm:$0xff] %vm230, %v222
  %246 = vst.msk [vmem:[%s3 + $0x78] sm:$0xff] %vm230, %v227
  // Predicated region
  $region14: #{encoder_forward.9} parent=0 // pred_check
    _
  $region15: #{encoder_forward.9} parent=0 // pred_check_branch
    %248 = sbr.rel (0) target = $region17
  $region16: #{encoder_forward.9} parent=0 // pred_region
    _
  $region17: #{encoder_forward.9} parent=0 // pred_fallthru
    _
  // Predicated region
  $region18: #{encoder_forward.9} parent=0 // pred_check
    _
  $region19: #{encoder_forward.9} parent=0 // pred_check_branch
    %250 = sbr.rel (0) target = $region21
  $region20: #{encoder_forward.9} parent=0 // pred_region
    _
  $region21: #{encoder_forward.9} parent=0 // pred_fallthru
    _

// kernel: encoder_forward.10
$region0: #{encoder_forward.10}
  #allocation0 [shape = 'u32[]', space=smem, size = 0x4, offset = 0x4, fixed_abs, tag = 'smem constant byte address 0x4 - core index']
  #allocation1 [shape = 'u32[144,128]{1,0:T(1,128)}', space=vmem, size = 0x12000, scoped, tag = 'internal scratch']
  %s0 = inlined_call_operand.vmem [shape: f32[128,8], index: 0, kind: input, shape index: {}]
  %s1 = inlined_call_operand.vmem [shape: f32[8,8], index: 1, kind: input, shape index: {}]
  %s2 = inlined_call_operand.vmem [shape: f32[1,8], index: 2, kind: input, shape index: {}]
  %s3 = inlined_call_operand.vmem [shape: f32[128,8], index: 3, kind: output, shape index: {}]
  %s4 = sld [smem:[#allocation0]]
  $region22: #{encoder_forward.10} parent=0
    _
  %s6 = ssub.s32 1, %s4
  %s7 = scalar_select 0, %s6, %s4
  // Predicated region
  $region2: #{encoder_forward.10} parent=0 // pred_check
    _
  $region3: #{encoder_forward.10} parent=0 // pred_check_branch
    %9 = sbr.rel (0) target = $region5
  $region4: #{encoder_forward.10} parent=0 // pred_region
    _
  $region5: #{encoder_forward.10} parent=0 // pred_fallthru
    _
  // Predicated region
  $region6: #{encoder_forward.10} parent=0 // pred_check
    _
  $region7: #{encoder_forward.10} parent=0 // pred_check_branch
    %11 = sbr.rel (0) target = $region9
  $region8: #{encoder_forward.10} parent=0 // pred_region
    _
  $region9: #{encoder_forward.10} parent=0 // pred_fallthru
    _
  // Predicated region
  $region10: #{encoder_forward.10} parent=0 // pred_check
    _
  $region11: #{encoder_forward.10} parent=0 // pred_check_branch
    %13 = sbr.rel (0) target = $region13
  $region12: #{encoder_forward.10} parent=0 // pred_region
    _
  $region13: #{encoder_forward.10} parent=0 // pred_fallthru
    _
  %v14 = vld [vmem:[%s0] sm:$0xff]
  %v15 = vld [vmem:[%s0 + $0x8] sm:$0xff]
  %v16 = vld [vmem:[%s0 + $0x10] sm:$0xff]
  %v17 = vld [vmem:[%s0 + $0x18] sm:$0xff]
  %v18 = vld [vmem:[%s0 + $0x20] sm:$0xff]
  %v19 = vld [vmem:[%s0 + $0x28] sm:$0xff]
  %v20 = vld [vmem:[%s0 + $0x30] sm:$0xff]
  %v21 = vld [vmem:[%s0 + $0x38] sm:$0xff]
  %v22 = vld [vmem:[%s0 + $0x40] sm:$0xff]
  %v23 = vld [vmem:[%s0 + $0x48] sm:$0xff]
  %v24 = vld [vmem:[%s0 + $0x50] sm:$0xff]
  %v25 = vld [vmem:[%s0 + $0x58] sm:$0xff]
  %v26 = vld [vmem:[%s0 + $0x60] sm:$0xff]
  %v27 = vld [vmem:[%s0 + $0x68] sm:$0xff]
  %v28 = vld [vmem:[%s0 + $0x70] sm:$0xff]
  %v29 = vld [vmem:[%s0 + $0x78] sm:$0xff]
  %v30 = vmul.f32 %v14, %v14
  %v31 = vmul.f32 %v15, %v15
  %v32 = vmul.f32 %v16, %v16
  %v33 = vmul.f32 %v17, %v17
  %v34 = vmul.f32 %v18, %v18
  %v35 = vmul.f32 %v19, %v19
  %v36 = vmul.f32 %v20, %v20
  %v37 = vmul.f32 %v21, %v21
  %v38 = vmul.f32 %v22, %v22
  %v39 = vmul.f32 %v23, %v23
  %v40 = vmul.f32 %v24, %v24
  %v41 = vmul.f32 %v25, %v25
  %v42 = vmul.f32 %v26, %v26
  %v43 = vmul.f32 %v27, %v27
  %v44 = vmul.f32 %v28, %v28
  %v45 = vmul.f32 %v29, %v29
  %v46 = vld [vmem:[%s1] sm:$0xff]
  %v47 = vld [vmem:[%s2] sm:$0x1]
  %v49 = vlaneseq
  %v50 = vshrl.u32 %v49, 7
  %v51 = vsub.s32 0, %v50
  %v52 = vrot.slane %v47, %v51
  %vm54 = vcmask 64512
  %v56 = vsel %vm54, %v30, 0
  %v59 = vsel %vm54, %v31, 0
  %v62 = vsel %vm54, %v32, 0
  %v65 = vsel %vm54, %v33, 0
  %v68 = vsel %vm54, %v34, 0
  %v71 = vsel %vm54, %v35, 0
  %v74 = vsel %vm54, %v36, 0
  %v77 = vsel %vm54, %v37, 0
  %v80 = vsel %vm54, %v38, 0
  %v83 = vsel %vm54, %v39, 0
  %v86 = vsel %vm54, %v40, 0
  %v89 = vsel %vm54, %v41, 0
  %v92 = vsel %vm54, %v42, 0
  %v95 = vsel %vm54, %v43, 0
  %v98 = vsel %vm54, %v44, 0
  %v101 = vsel %vm54, %v45, 0
  %103 = vmatprep.subr.mxu0 0.0
  %104 = vmatpush1.msra.mxu0 0.0
  %105 = vmatprep.subr.mxu0 0.0
  %106 = vmatpush1.msra.mxu0 0.0
  %107 = vmatprep.subr.mxu0 0.0
  %108 = vmatpush1.msra.mxu0 0.0
  %109 = vmatprep.subr.mxu0 0.0
  %110 = vmatpush1.msra.mxu0 0.0
  %111 = vmatprep.subr.mxu0 0.0
  %112 = vmatpush1.msra.mxu0 0.0
  %113 = vmatprep.subr.mxu0 0.0
  %114 = vmatpush1.msra.mxu0 0.0
  %115 = vmatprep.subr.mxu0 0.0
  %116 = vmatpush1.msra.mxu0 0.0
  %117 = vmatprep.subr.mxu0 0.0
  %118 = vmatpush1.msra.mxu0 0.0
  %119 = vmatprep.subr.mxu0 0.0
  %120 = vmatpush1.msra.mxu0 0.0
  %121 = vmatprep.subr.mxu0 0.0
  %122 = vmatpush1.msra.mxu0 0.0
  %123 = vmatprep.subr.mxu0 0.0
  %124 = vmatpush1.msra.mxu0 0.0
  %125 = vmatprep.subr.mxu0 0.0
  %126 = vmatpush1.msra.mxu0 0.0
  %127 = vmatprep.subr.mxu0 0.0
  %128 = vmatpush1.msra.mxu0 0.0
  %129 = vmatprep.subr.mxu0 0.0
  %130 = vmatpush1.msra.mxu0 0.0
  %131 = vmatprep.subr.mxu0 0.0
  %132 = vmatpush1.msra.mxu0 0.0
  %133 = vmatprep.subr.mxu0 0.0
  %134 = vmatpush1.msra.mxu0 %v46
  %135 = vmatprep.subr.mxu0 0.0
  %136 = vmatpush2.msra.mxu0 0.0
  %137 = vmatprep.subr.mxu0 0.0
  %138 = vmatpush2.msra.mxu0 0.0
  %139 = vmatprep.subr.mxu0 0.0
  %140 = vmatpush2.msra.mxu0 0.0
  %141 = vmatprep.subr.mxu0 0.0
  %142 = vmatpush2.msra.mxu0 0.0
  %143 = vmatprep.subr.mxu0 0.0
  %144 = vmatpush2.msra.mxu0 0.0
  %145 = vmatprep.subr.mxu0 0.0
  %146 = vmatpush2.msra.mxu0 0.0
  %147 = vmatprep.subr.mxu0 0.0
  %148 = vmatpush2.msra.mxu0 0.0
  %149 = vmatprep.subr.mxu0 0.0
  %150 = vmatpush2.msra.mxu0 0.0
  %151 = vmatprep.subr.mxu0 0.0
  %152 = vmatpush2.msra.mxu0 0.0
  %153 = vmatprep.subr.mxu0 0.0
  %154 = vmatpush2.msra.mxu0 0.0
  %155 = vmatprep.subr.mxu0 0.0
  %156 = vmatpush2.msra.mxu0 0.0
  %157 = vmatprep.subr.mxu0 0.0
  %158 = vmatpush2.msra.mxu0 0.0
  %159 = vmatprep.subr.mxu0 0.0
  %160 = vmatpush2.msra.mxu0 0.0
  %161 = vmatprep.subr.mxu0 0.0
  %162 = vmatpush2.msra.mxu0 0.0
  %163 = vmatprep.subr.mxu0 0.0
  %164 = vmatpush2.msra.mxu0 0.0
  %165 = vmatprep.subr.mxu0 0.0
  %166 = vmatpush2.msra.mxu0 0.0
  %167 = vmatprep.mubr.f32.mxu0 0.0
  %168 = vmatmul.mubr.f32.gmra.mxu0 %v56
  %v169 = vpop.f32.mrf.mxu0
  %v170 = vadd.f32 %v52, %v169
  %v171 = vpop.f32.mrf.mxu0
  %172 = vmatprep.mubr.f32.mxu0 0.0
  %173 = vmatmul.mubr.f32.gmra.mxu0 %v59
  %v174 = vpop.f32.mrf.mxu0
  %v175 = vadd.f32 %v52, %v174
  %v176 = vpop.f32.mrf.mxu0
  %177 = vmatprep.mubr.f32.mxu0 0.0
  %178 = vmatmul.mubr.f32.gmra.mxu0 %v62
  %v179 = vpop.f32.mrf.mxu0
  %v180 = vadd.f32 %v52, %v179
  %v181 = vpop.f32.mrf.mxu0
  %182 = vmatprep.mubr.f32.mxu0 0.0
  %183 = vmatmul.mubr.f32.gmra.mxu0 %v65
  %v184 = vpop.f32.mrf.mxu0
  %v185 = vadd.f32 %v52, %v184
  %v186 = vpop.f32.mrf.mxu0
  %187 = vmatprep.mubr.f32.mxu0 0.0
  %188 = vmatmul.mubr.f32.gmra.mxu0 %v68
  %v189 = vpop.f32.mrf.mxu0
  %v190 = vadd.f32 %v52, %v189
  %v191 = vpop.f32.mrf.mxu0
  %192 = vmatprep.mubr.f32.mxu0 0.0
  %193 = vmatmul.mubr.f32.gmra.mxu0 %v71
  %v194 = vpop.f32.mrf.mxu0
  %v195 = vadd.f32 %v52, %v194
  %v196 = vpop.f32.mrf.mxu0
  %197 = vmatprep.mubr.f32.mxu0 0.0
  %198 = vmatmul.mubr.f32.gmra.mxu0 %v74
  %v199 = vpop.f32.mrf.mxu0
  %v200 = vadd.f32 %v52, %v199
  %v201 = vpop.f32.mrf.mxu0
  %202 = vmatprep.mubr.f32.mxu0 0.0
  %203 = vmatmul.mubr.f32.gmra.mxu0 %v77
  %v204 = vpop.f32.mrf.mxu0
  %v205 = vadd.f32 %v52, %v204
  %v206 = vpop.f32.mrf.mxu0
  %207 = vmatprep.mubr.f32.mxu0 0.0
  %208 = vmatmul.mubr.f32.gmra.mxu0 %v80
  %v209 = vpop.f32.mrf.mxu0
  %v210 = vadd.f32 %v52, %v209
  %v211 = vpop.f32.mrf.mxu0
  %212 = vmatprep.mubr.f32.mxu0 0.0
  %213 = vmatmul.mubr.f32.gmra.mxu0 %v83
  %v214 = vpop.f32.mrf.mxu0
  %v215 = vadd.f32 %v52, %v214
  %v216 = vpop.f32.mrf.mxu0
  %217 = vmatprep.mubr.f32.mxu0 0.0
  %218 = vmatmul.mubr.f32.gmra.mxu0 %v86
  %v219 = vpop.f32.mrf.mxu0
  %v220 = vadd.f32 %v52, %v219
  %v221 = vpop.f32.mrf.mxu0
  %222 = vmatprep.mubr.f32.mxu0 0.0
  %223 = vmatmul.mubr.f32.gmra.mxu0 %v89
  %v224 = vpop.f32.mrf.mxu0
  %v225 = vadd.f32 %v52, %v224
  %v226 = vpop.f32.mrf.mxu0
  %227 = vmatprep.mubr.f32.mxu0 0.0
  %228 = vmatmul.mubr.f32.gmra.mxu0 %v92
  %v229 = vpop.f32.mrf.mxu0
  %v230 = vadd.f32 %v52, %v229
  %v231 = vpop.f32.mrf.mxu0
  %232 = vmatprep.mubr.f32.mxu0 0.0
  %233 = vmatmul.mubr.f32.gmra.mxu0 %v95
  %v234 = vpop.f32.mrf.mxu0
  %v235 = vadd.f32 %v52, %v234
  %v236 = vpop.f32.mrf.mxu0
  %237 = vmatprep.mubr.f32.mxu0 0.0
  %238 = vmatmul.mubr.f32.gmra.mxu0 %v98
  %v239 = vpop.f32.mrf.mxu0
  %v240 = vadd.f32 %v52, %v239
  %v241 = vpop.f32.mrf.mxu0
  %242 = vmatprep.mubr.f32.mxu0 0.0
  %243 = vmatmul.mubr.f32.gmra.mxu0 %v101
  %v244 = vpop.f32.mrf.mxu0
  %v245 = vadd.f32 %v52, %v244
  %v246 = vpop.f32.mrf.mxu0
  %247 = vdwg.mxu0
  %v248 = vrsqrt.pop %v170
  %v249 = vrsqrt.pop %v175
  %v250 = vrsqrt.pop %v180
  %v251 = vrsqrt.pop %v185
  %v252 = vrsqrt.pop %v190
  %v253 = vrsqrt.pop %v195
  %v254 = vrsqrt.pop %v200
  %v255 = vrsqrt.pop %v205
  %v256 = vrsqrt.pop %v210
  %v257 = vrsqrt.pop %v215
  %v258 = vrsqrt.pop %v220
  %v259 = vrsqrt.pop %v225
  %v260 = vrsqrt.pop %v230
  %v261 = vrsqrt.pop %v235
  %v262 = vrsqrt.pop %v240
  %v263 = vrsqrt.pop %v245
  %v264 = vmul.f32 %v14, %v248
  %v265 = vmul.f32 %v15, %v249
  %v266 = vmul.f32 %v16, %v250
  %v267 = vmul.f32 %v17, %v251
  %v268 = vmul.f32 %v18, %v252
  %v269 = vmul.f32 %v19, %v253
  %v270 = vmul.f32 %v20, %v254
  %v271 = vmul.f32 %v21, %v255
  %v272 = vmul.f32 %v22, %v256
  %v273 = vmul.f32 %v23, %v257
  %v274 = vmul.f32 %v24, %v258
  %v275 = vmul.f32 %v25, %v259
  %v276 = vmul.f32 %v26, %v260
  %v277 = vmul.f32 %v27, %v261
  %v278 = vmul.f32 %v28, %v262
  %v279 = vmul.f32 %v29, %v263
  %280 = vst.msk [vmem:[%s3] sm:$0xff] %vm54, %v264
  %281 = vst.msk [vmem:[%s3 + $0x8] sm:$0xff] %vm54, %v265
  %282 = vst.msk [vmem:[%s3 + $0x10] sm:$0xff] %vm54, %v266
  %283 = vst.msk [vmem:[%s3 + $0x18] sm:$0xff] %vm54, %v267
  %284 = vst.msk [vmem:[%s3 + $0x20] sm:$0xff] %vm54, %v268
  %285 = vst.msk [vmem:[%s3 + $0x28] sm:$0xff] %vm54, %v269
  %286 = vst.msk [vmem:[%s3 + $0x30] sm:$0xff] %vm54, %v270
  %287 = vst.msk [vmem:[%s3 + $0x38] sm:$0xff] %vm54, %v271
  %288 = vst.msk [vmem:[%s3 + $0x40] sm:$0xff] %vm54, %v272
  %289 = vst.msk [vmem:[%s3 + $0x48] sm:$0xff] %vm54, %v273
  %290 = vst.msk [vmem:[%s3 + $0x50] sm:$0xff] %vm54, %v274
  %291 = vst.msk [vmem:[%s3 + $0x58] sm:$0xff] %vm54, %v275
  %292 = vst.msk [vmem:[%s3 + $0x60] sm:$0xff] %vm54, %v276
  %293 = vst.msk [vmem:[%s3 + $0x68] sm:$0xff] %vm54, %v277
  %294 = vst.msk [vmem:[%s3 + $0x70] sm:$0xff] %vm54, %v278
  %295 = vst.msk [vmem:[%s3 + $0x78] sm:$0xff] %vm54, %v279
  // Predicated region
  $region14: #{encoder_forward.10} parent=0 // pred_check
    _
  $region15: #{encoder_forward.10} parent=0 // pred_check_branch
    %297 = sbr.rel (0) target = $region17
  $region16: #{encoder_forward.10} parent=0 // pred_region
    _
  $region17: #{encoder_forward.10} parent=0 // pred_fallthru
    _
  // Predicated region
  $region18: #{encoder_forward.10} parent=0 // pred_check
    _
  $region19: #{encoder_forward.10} parent=0 // pred_check_branch
    %299 = sbr.rel (0) target = $region21
  $region20: #{encoder_forward.10} parent=0 // pred_region
    _
  $region21: #{encoder_forward.10} parent=0 // pred_fallthru
    _

// kernel: encoder_forward.11
$region0: #{encoder_forward.11}
  #allocation0 [shape = 'u32[]', space=smem, size = 0x4, offset = 0x4, fixed_abs, tag = 'smem constant byte address 0x4 - core index']
  #allocation1 [shape = 'u32[144,128]{1,0:T(1,128)}', space=vmem, size = 0x12000, scoped, tag = 'internal scratch']
  %s0 = inlined_call_operand.vmem [shape: f32[32,256], index: 0, kind: input, shape index: {}]
  %s1 = inlined_call_operand.vmem [shape: f32[256,8], index: 1, kind: input, shape index: {}]
  %s2 = inlined_call_operand.vmem [shape: f32[1,8], index: 2, kind: input, shape index: {}]
  %s3 = inlined_call_operand.vmem [shape: f32[32,8], index: 3, kind: output, shape index: {}]
  %s4 = sld [smem:[#allocation0]]
  $region22: #{encoder_forward.11} parent=0
    _
  %s6 = ssub.s32 1, %s4
  %s7 = scalar_select 0, %s6, %s4
  // Predicated region
  $region2: #{encoder_forward.11} parent=0 // pred_check
    _
  $region3: #{encoder_forward.11} parent=0 // pred_check_branch
    %9 = sbr.rel (0) target = $region5
  $region4: #{encoder_forward.11} parent=0 // pred_region
    _
  $region5: #{encoder_forward.11} parent=0 // pred_fallthru
    _
  // Predicated region
  $region6: #{encoder_forward.11} parent=0 // pred_check
    _
  $region7: #{encoder_forward.11} parent=0 // pred_check_branch
    %11 = sbr.rel (0) target = $region9
  $region8: #{encoder_forward.11} parent=0 // pred_region
    _
  $region9: #{encoder_forward.11} parent=0 // pred_fallthru
    _
  // Predicated region
  $region10: #{encoder_forward.11} parent=0 // pred_check
    _
  $region11: #{encoder_forward.11} parent=0 // pred_check_branch
    %13 = sbr.rel (0) target = $region13
  $region12: #{encoder_forward.11} parent=0 // pred_region
    _
  $region13: #{encoder_forward.11} parent=0 // pred_fallthru
    _
  %v14 = vld [vmem:[%s0] sm:$0xff]
  %v15 = vld [vmem:[%s0 + $0x8] sm:$0xff]
  %v16 = vld [vmem:[%s0 + $0x10] sm:$0xff]
  %v17 = vld [vmem:[%s0 + $0x18] sm:$0xff]
  %v18 = vld [vmem:[%s0 + $0x20] sm:$0xff]
  %v19 = vld [vmem:[%s0 + $0x28] sm:$0xff]
  %v20 = vld [vmem:[%s0 + $0x30] sm:$0xff]
  %v21 = vld [vmem:[%s0 + $0x38] sm:$0xff]
  %v22 = vld [vmem:[%s1] sm:$0xff]
  %v23 = vld [vmem:[%s1 + $0x8] sm:$0xff]
  %v24 = vld [vmem:[%s1 + $0x10] sm:$0xff]
  %v25 = vld [vmem:[%s1 + $0x18] sm:$0xff]
  %v26 = vld [vmem:[%s1 + $0x20] sm:$0xff]
  %v27 = vld [vmem:[%s1 + $0x28] sm:$0xff]
  %v28 = vld [vmem:[%s1 + $0x30] sm:$0xff]
  %v29 = vld [vmem:[%s1 + $0x38] sm:$0xff]
  %v30 = vld [vmem:[%s1 + $0x40] sm:$0xff]
  %v31 = vld [vmem:[%s1 + $0x48] sm:$0xff]
  %v32 = vld [vmem:[%s1 + $0x50] sm:$0xff]
  %v33 = vld [vmem:[%s1 + $0x58] sm:$0xff]
  %v34 = vld [vmem:[%s1 + $0x60] sm:$0xff]
  %v35 = vld [vmem:[%s1 + $0x68] sm:$0xff]
  %v36 = vld [vmem:[%s1 + $0x70] sm:$0xff]
  %v37 = vld [vmem:[%s1 + $0x78] sm:$0xff]
  %v38 = vld [vmem:[%s1 + $0x80] sm:$0xff]
  %v39 = vld [vmem:[%s1 + $0x88] sm:$0xff]
  %v40 = vld [vmem:[%s1 + $0x90] sm:$0xff]
  %v41 = vld [vmem:[%s1 + $0x98] sm:$0xff]
  %v42 = vld [vmem:[%s1 + $0xa0] sm:$0xff]
  %v43 = vld [vmem:[%s1 + $0xa8] sm:$0xff]
  %v44 = vld [vmem:[%s1 + $0xb0] sm:$0xff]
  %v45 = vld [vmem:[%s1 + $0xb8] sm:$0xff]
  %v46 = vld [vmem:[%s1 + $0xc0] sm:$0xff]
  %v47 = vld [vmem:[%s1 + $0xc8] sm:$0xff]
  %v48 = vld [vmem:[%s1 + $0xd0] sm:$0xff]
  %v49 = vld [vmem:[%s1 + $0xd8] sm:$0xff]
  %v50 = vld [vmem:[%s1 + $0xe0] sm:$0xff]
  %v51 = vld [vmem:[%s1 + $0xe8] sm:$0xff]
  %v52 = vld [vmem:[%s1 + $0xf0] sm:$0xff]
  %v53 = vld [vmem:[%s1 + $0xf8] sm:$0xff]
  %v54 = vld [vmem:[%s2] sm:$0x1]
  %v56 = vlaneseq
  %v57 = vshrl.u32 %v56, 7
  %v58 = vsub.s32 0, %v57
  %v59 = vrot.slane %v54, %v58
  %61 = vmatprep.subr.mxu0 0.0
  %62 = vmatpush1.msra.mxu0 %v37
  %63 = vmatprep.subr.mxu0 0.0
  %64 = vmatpush1.msra.mxu0 %v36
  %65 = vmatprep.subr.mxu0 0.0
  %66 = vmatpush1.msra.mxu0 %v35
  %67 = vmatprep.subr.mxu0 0.0
  %68 = vmatpush1.msra.mxu0 %v34
  %69 = vmatprep.subr.mxu0 0.0
  %70 = vmatpush1.msra.mxu0 %v33
  %71 = vmatprep.subr.mxu0 0.0
  %72 = vmatpush1.msra.mxu0 %v32
  %73 = vmatprep.subr.mxu0 0.0
  %74 = vmatpush1.msra.mxu0 %v31
  %75 = vmatprep.subr.mxu0 0.0
  %76 = vmatpush1.msra.mxu0 %v30
  %77 = vmatprep.subr.mxu0 0.0
  %78 = vmatpush1.msra.mxu0 %v29
  %79 = vmatprep.subr.mxu0 0.0
  %80 = vmatpush1.msra.mxu0 %v28
  %81 = vmatprep.subr.mxu0 0.0
  %82 = vmatpush1.msra.mxu0 %v27
  %83 = vmatprep.subr.mxu0 0.0
  %84 = vmatpush1.msra.mxu0 %v26
  %85 = vmatprep.subr.mxu0 0.0
  %86 = vmatpush1.msra.mxu0 %v25
  %87 = vmatprep.subr.mxu0 0.0
  %88 = vmatpush1.msra.mxu0 %v24
  %89 = vmatprep.subr.mxu0 0.0
  %90 = vmatpush1.msra.mxu0 %v23
  %91 = vmatprep.subr.mxu0 0.0
  %92 = vmatpush1.msra.mxu0 %v22
  %93 = vmatprep.subr.mxu0 0.0
  %94 = vmatpush2.msra.mxu0 %v53
  %95 = vmatprep.subr.mxu0 0.0
  %96 = vmatpush2.msra.mxu0 %v52
  %97 = vmatprep.subr.mxu0 0.0
  %98 = vmatpush2.msra.mxu0 %v51
  %99 = vmatprep.subr.mxu0 0.0
  %100 = vmatpush2.msra.mxu0 %v50
  %101 = vmatprep.subr.mxu0 0.0
  %102 = vmatpush2.msra.mxu0 %v49
  %103 = vmatprep.subr.mxu0 0.0
  %104 = vmatpush2.msra.mxu0 %v48
  %105 = vmatprep.subr.mxu0 0.0
  %106 = vmatpush2.msra.mxu0 %v47
  %107 = vmatprep.subr.mxu0 0.0
  %108 = vmatpush2.msra.mxu0 %v46
  %109 = vmatprep.subr.mxu0 0.0
  %110 = vmatpush2.msra.mxu0 %v45
  %111 = vmatprep.subr.mxu0 0.0
  %112 = vmatpush2.msra.mxu0 %v44
  %113 = vmatprep.subr.mxu0 0.0
  %114 = vmatpush2.msra.mxu0 %v43
  %115 = vmatprep.subr.mxu0 0.0
  %116 = vmatpush2.msra.mxu0 %v42
  %117 = vmatprep.subr.mxu0 0.0
  %118 = vmatpush2.msra.mxu0 %v41
  %119 = vmatprep.subr.mxu0 0.0
  %120 = vmatpush2.msra.mxu0 %v40
  %121 = vmatprep.subr.mxu0 0.0
  %122 = vmatpush2.msra.mxu0 %v39
  %123 = vmatprep.subr.mxu0 0.0
  %124 = vmatpush2.msra.mxu0 %v38
  %125 = vmatprep.mubr.f32.mxu0 %v15
  %126 = vmatmul.mubr.f32.gmra.mxu0 %v14
  %v127 = vpop.f32.mrf.mxu0
  %v128 = vadd.f32 %v59, %v127
  %v129 = vpop.f32.mrf.mxu0
  %130 = vmatprep.mubr.f32.mxu0 %v17
  %131 = vmatmul.mubr.f32.gmra.mxu0 %v16
  %v132 = vpop.f32.mrf.mxu0
  %v133 = vadd.f32 %v59, %v132
  %v134 = vpop.f32.mrf.mxu0
  %135 = vmatprep.mubr.f32.mxu0 %v19
  %136 = vmatmul.mubr.f32.gmra.mxu0 %v18
  %v137 = vpop.f32.mrf.mxu0
  %v138 = vadd.f32 %v59, %v137
  %v139 = vpop.f32.mrf.mxu0
  %140 = vmatprep.mubr.f32.mxu0 %v21
  %141 = vmatmul.mubr.f32.gmra.mxu0 %v20
  %v142 = vpop.f32.mrf.mxu0
  %v143 = vadd.f32 %v59, %v142
  %v144 = vpop.f32.mrf.mxu0
  %145 = vdwg.mxu0
  %vm146 = vcmask 64512
  %147 = vst.msk [vmem:[%s3] sm:$0xff] %vm146, %v128
  %148 = vst.msk [vmem:[%s3 + $0x8] sm:$0xff] %vm146, %v133
  %149 = vst.msk [vmem:[%s3 + $0x10] sm:$0xff] %vm146, %v138
  %150 = vst.msk [vmem:[%s3 + $0x18] sm:$0xff] %vm146, %v143
  // Predicated region
  $region14: #{encoder_forward.11} parent=0 // pred_check
    _
  $region15: #{encoder_forward.11} parent=0 // pred_check_branch
    %152 = sbr.rel (0) target = $region17
  $region16: #{encoder_forward.11} parent=0 // pred_region
    _
  $region17: #{encoder_forward.11} parent=0 // pred_fallthru
    _
  // Predicated region
  $region18: #{encoder_forward.11} parent=0 // pred_check
    _
  $region19: #{encoder_forward.11} parent=0 // pred_check_branch
    %154 = sbr.rel (0) target = $region21
  $region20: #{encoder_forward.11} parent=0 // pred_region
    _
  $region21: #{encoder_forward.11} parent=0 // pred_fallthru
    _

// kernel: encoder_forward.12
$region0: #{encoder_forward.12}
  #allocation0 [shape = 'u32[]', space=smem, size = 0x4, offset = 0x4, fixed_abs, tag = 'smem constant byte address 0x4 - core index']
  #allocation1 [shape = 'u32[144,128]{1,0:T(1,128)}', space=vmem, size = 0x12000, scoped, tag = 'internal scratch']
  %s0 = inlined_call_operand.vmem [shape: f32[32,8], index: 0, kind: input, shape index: {}]
  %s1 = inlined_call_operand.vmem [shape: f32[8,8], index: 1, kind: input, shape index: {}]
  %s2 = inlined_call_operand.vmem [shape: f32[1,8], index: 2, kind: input, shape index: {}]
  %s3 = inlined_call_operand.vmem [shape: f32[32,8], index: 3, kind: output, shape index: {}]
  %s4 = sld [smem:[#allocation0]]
  $region22: #{encoder_forward.12} parent=0
    _
  %s6 = ssub.s32 1, %s4
  %s7 = scalar_select 0, %s6, %s4
  // Predicated region
  $region2: #{encoder_forward.12} parent=0 // pred_check
    _
  $region3: #{encoder_forward.12} parent=0 // pred_check_branch
    %9 = sbr.rel (0) target = $region5
  $region4: #{encoder_forward.12} parent=0 // pred_region
    _
  $region5: #{encoder_forward.12} parent=0 // pred_fallthru
    _
  // Predicated region
  $region6: #{encoder_forward.12} parent=0 // pred_check
    _
  $region7: #{encoder_forward.12} parent=0 // pred_check_branch
    %11 = sbr.rel (0) target = $region9
  $region8: #{encoder_forward.12} parent=0 // pred_region
    _
  $region9: #{encoder_forward.12} parent=0 // pred_fallthru
    _
  // Predicated region
  $region10: #{encoder_forward.12} parent=0 // pred_check
    _
  $region11: #{encoder_forward.12} parent=0 // pred_check_branch
    %13 = sbr.rel (0) target = $region13
  $region12: #{encoder_forward.12} parent=0 // pred_region
    _
  $region13: #{encoder_forward.12} parent=0 // pred_fallthru
    _
  %v14 = vld [vmem:[%s0] sm:$0xff]
  %v15 = vld [vmem:[%s0 + $0x8] sm:$0xff]
  %v16 = vld [vmem:[%s0 + $0x10] sm:$0xff]
  %v17 = vld [vmem:[%s0 + $0x18] sm:$0xff]
  %v18 = vmul.f32 %v14, %v14
  %v19 = vmul.f32 %v15, %v15
  %v20 = vmul.f32 %v16, %v16
  %v21 = vmul.f32 %v17, %v17
  %v22 = vld [vmem:[%s1] sm:$0xff]
  %v23 = vld [vmem:[%s2] sm:$0x1]
  %v25 = vlaneseq
  %v26 = vshrl.u32 %v25, 7
  %v27 = vsub.s32 0, %v26
  %v28 = vrot.slane %v23, %v27
  %vm30 = vcmask 64512
  %v32 = vsel %vm30, %v18, 0
  %v35 = vsel %vm30, %v19, 0
  %v38 = vsel %vm30, %v20, 0
  %v41 = vsel %vm30, %v21, 0
  %43 = vmatprep.subr.mxu0 0.0
  %44 = vmatpush1.msra.mxu0 0.0
  %45 = vmatprep.subr.mxu0 0.0
  %46 = vmatpush1.msra.mxu0 0.0
  %47 = vmatprep.subr.mxu0 0.0
  %48 = vmatpush1.msra.mxu0 0.0
  %49 = vmatprep.subr.mxu0 0.0
  %50 = vmatpush1.msra.mxu0 0.0
  %51 = vmatprep.subr.mxu0 0.0
  %52 = vmatpush1.msra.mxu0 0.0
  %53 = vmatprep.subr.mxu0 0.0
  %54 = vmatpush1.msra.mxu0 0.0
  %55 = vmatprep.subr.mxu0 0.0
  %56 = vmatpush1.msra.mxu0 0.0
  %57 = vmatprep.subr.mxu0 0.0
  %58 = vmatpush1.msra.mxu0 0.0
  %59 = vmatprep.subr.mxu0 0.0
  %60 = vmatpush1.msra.mxu0 0.0
  %61 = vmatprep.subr.mxu0 0.0
  %62 = vmatpush1.msra.mxu0 0.0
  %63 = vmatprep.subr.mxu0 0.0
  %64 = vmatpush1.msra.mxu0 0.0
  %65 = vmatprep.subr.mxu0 0.0
  %66 = vmatpush1.msra.mxu0 0.0
  %67 = vmatprep.subr.mxu0 0.0
  %68 = vmatpush1.msra.mxu0 0.0
  %69 = vmatprep.subr.mxu0 0.0
  %70 = vmatpush1.msra.mxu0 0.0
  %71 = vmatprep.subr.mxu0 0.0
  %72 = vmatpush1.msra.mxu0 0.0
  %73 = vmatprep.subr.mxu0 0.0
  %74 = vmatpush1.msra.mxu0 %v22
  %75 = vmatprep.subr.mxu0 0.0
  %76 = vmatpush2.msra.mxu0 0.0
  %77 = vmatprep.subr.mxu0 0.0
  %78 = vmatpush2.msra.mxu0 0.0
  %79 = vmatprep.subr.mxu0 0.0
  %80 = vmatpush2.msra.mxu0 0.0
  %81 = vmatprep.subr.mxu0 0.0
  %82 = vmatpush2.msra.mxu0 0.0
  %83 = vmatprep.subr.mxu0 0.0
  %84 = vmatpush2.msra.mxu0 0.0
  %85 = vmatprep.subr.mxu0 0.0
  %86 = vmatpush2.msra.mxu0 0.0
  %87 = vmatprep.subr.mxu0 0.0
  %88 = vmatpush2.msra.mxu0 0.0
  %89 = vmatprep.subr.mxu0 0.0
  %90 = vmatpush2.msra.mxu0 0.0
  %91 = vmatprep.subr.mxu0 0.0
  %92 = vmatpush2.msra.mxu0 0.0
  %93 = vmatprep.subr.mxu0 0.0
  %94 = vmatpush2.msra.mxu0 0.0
  %95 = vmatprep.subr.mxu0 0.0
  %96 = vmatpush2.msra.mxu0 0.0
  %97 = vmatprep.subr.mxu0 0.0
  %98 = vmatpush2.msra.mxu0 0.0
  %99 = vmatprep.subr.mxu0 0.0
  %100 = vmatpush2.msra.mxu0 0.0
  %101 = vmatprep.subr.mxu0 0.0
  %102 = vmatpush2.msra.mxu0 0.0
  %103 = vmatprep.subr.mxu0 0.0
  %104 = vmatpush2.msra.mxu0 0.0
  %105 = vmatprep.subr.mxu0 0.0
  %106 = vmatpush2.msra.mxu0 0.0
  %107 = vmatprep.mubr.f32.mxu0 0.0
  %108 = vmatmul.mubr.f32.gmra.mxu0 %v32
  %v109 = vpop.f32.mrf.mxu0
  %v110 = vadd.f32 %v28, %v109
  %v111 = vpop.f32.mrf.mxu0
  %112 = vmatprep.mubr.f32.mxu0 0.0
  %113 = vmatmul.mubr.f32.gmra.mxu0 %v35
  %v114 = vpop.f32.mrf.mxu0
  %v115 = vadd.f32 %v28, %v114
  %v116 = vpop.f32.mrf.mxu0
  %117 = vmatprep.mubr.f32.mxu0 0.0
  %118 = vmatmul.mubr.f32.gmra.mxu0 %v38
  %v119 = vpop.f32.mrf.mxu0
  %v120 = vadd.f32 %v28, %v119
  %v121 = vpop.f32.mrf.mxu0
  %122 = vmatprep.mubr.f32.mxu0 0.0
  %123 = vmatmul.mubr.f32.gmra.mxu0 %v41
  %v124 = vpop.f32.mrf.mxu0
  %v125 = vadd.f32 %v28, %v124
  %v126 = vpop.f32.mrf.mxu0
  %127 = vdwg.mxu0
  %v128 = vrsqrt.pop %v110
  %v129 = vrsqrt.pop %v115
  %v130 = vrsqrt.pop %v120
  %v131 = vrsqrt.pop %v125
  %v132 = vmul.f32 %v14, %v128
  %v133 = vmul.f32 %v15, %v129
  %v134 = vmul.f32 %v16, %v130
  %v135 = vmul.f32 %v17, %v131
  %136 = vst.msk [vmem:[%s3] sm:$0xff] %vm30, %v132
  %137 = vst.msk [vmem:[%s3 + $0x8] sm:$0xff] %vm30, %v133
  %138 = vst.msk [vmem:[%s3 + $0x10] sm:$0xff] %vm30, %v134
  %139 = vst.msk [vmem:[%s3 + $0x18] sm:$0xff] %vm30, %v135
  // Predicated region
  $region14: #{encoder_forward.12} parent=0 // pred_check
    _
  $region15: #{encoder_forward.12} parent=0 // pred_check_branch
    %141 = sbr.rel (0) target = $region17
  $region16: #{encoder_forward.12} parent=0 // pred_region
    _
  $region17: #{encoder_forward.12} parent=0 // pred_fallthru
    _
  // Predicated region
  $region18: #{encoder_forward.12} parent=0 // pred_check
    _
  $region19: #{encoder_forward.12} parent=0 // pred_check_branch
    %143 = sbr.rel (0) target = $region21
  $region20: #{encoder_forward.12} parent=0 // pred_region
    _
  $region21: #{encoder_forward.12} parent=0 // pred_fallthru
    _

// kernel: encoder_forward.13
$region0: #{encoder_forward.13}
  #allocation0 [shape = 'u32[]', space=smem, size = 0x4, offset = 0x4, fixed_abs, tag = 'smem constant byte address 0x4 - core index']
  #allocation1 [shape = 'u32[144,128]{1,0:T(1,128)}', space=vmem, size = 0x12000, scoped, tag = 'internal scratch']
  %s0 = inlined_call_operand.vmem [shape: f32[8,256], index: 0, kind: input, shape index: {}]
  %s1 = inlined_call_operand.vmem [shape: f32[256,8], index: 1, kind: input, shape index: {}]
  %s2 = inlined_call_operand.vmem [shape: f32[1,8], index: 2, kind: input, shape index: {}]
  %s3 = inlined_call_operand.hbm [shape: f32[8,8], index: 3, kind: output, shape index: {}]
  %s4 = sld [smem:[#allocation0]]
  $region22: #{encoder_forward.13} parent=0
    _
  %s6 = ssub.s32 1, %s4
  %s7 = scalar_select 0, %s6, %s4
  $region1: #{encoder_forward.13} parent=0
    #allocation2 [shape = 'u8[4096]{0}', space=vmem, size = 0x1000, scoped, tag = 'output window, operand 0, single buffered']
    #allocation3 [shape = 's32[1]{0}', space=sflag, size = 0x4, scoped, tag = 'scoped memory for encoder_forward.13']
    %8 = vsyncpa [#allocation3], 0
    // Predicated region
    $region2: #{encoder_forward.13} parent=1 // pred_check
      _
    $region3: #{encoder_forward.13} parent=1 // pred_check_branch
      %10 = sbr.rel (0) target = $region5
    $region4: #{encoder_forward.13} parent=1 // pred_region
      _
    $region5: #{encoder_forward.13} parent=1 // pred_fallthru
      _
    // Predicated region
    $region6: #{encoder_forward.13} parent=1 // pred_check
      _
    $region7: #{encoder_forward.13} parent=1 // pred_check_branch
      %12 = sbr.rel (0) target = $region9
    $region8: #{encoder_forward.13} parent=1 // pred_region
      _
    $region9: #{encoder_forward.13} parent=1 // pred_fallthru
      _
    // Predicated region
    $region10: #{encoder_forward.13} parent=1 // pred_check
      _
    $region11: #{encoder_forward.13} parent=1 // pred_check_branch
      %14 = sbr.rel (0) target = $region13
    $region12: #{encoder_forward.13} parent=1 // pred_region
      _
    $region13: #{encoder_forward.13} parent=1 // pred_fallthru
      _
    %v15 = vld [vmem:[%s0] sm:$0xff]
    %v16 = vld [vmem:[%s0 + $0x8] sm:$0xff]
    %v17 = vld [vmem:[%s1] sm:$0xff]
    %v18 = vld [vmem:[%s1 + $0x8] sm:$0xff]
    %v19 = vld [vmem:[%s1 + $0x10] sm:$0xff]
    %v20 = vld [vmem:[%s1 + $0x18] sm:$0xff]
    %v21 = vld [vmem:[%s1 + $0x20] sm:$0xff]
    %v22 = vld [vmem:[%s1 + $0x28] sm:$0xff]
    %v23 = vld [vmem:[%s1 + $0x30] sm:$0xff]
    %v24 = vld [vmem:[%s1 + $0x38] sm:$0xff]
    %v25 = vld [vmem:[%s1 + $0x40] sm:$0xff]
    %v26 = vld [vmem:[%s1 + $0x48] sm:$0xff]
    %v27 = vld [vmem:[%s1 + $0x50] sm:$0xff]
    %v28 = vld [vmem:[%s1 + $0x58] sm:$0xff]
    %v29 = vld [vmem:[%s1 + $0x60] sm:$0xff]
    %v30 = vld [vmem:[%s1 + $0x68] sm:$0xff]
    %v31 = vld [vmem:[%s1 + $0x70] sm:$0xff]
    %v32 = vld [vmem:[%s1 + $0x78] sm:$0xff]
    %v33 = vld [vmem:[%s1 + $0x80] sm:$0xff]
    %v34 = vld [vmem:[%s1 + $0x88] sm:$0xff]
    %v35 = vld [vmem:[%s1 + $0x90] sm:$0xff]
    %v36 = vld [vmem:[%s1 + $0x98] sm:$0xff]
    %v37 = vld [vmem:[%s1 + $0xa0] sm:$0xff]
    %v38 = vld [vmem:[%s1 + $0xa8] sm:$0xff]
    %v39 = vld [vmem:[%s1 + $0xb0] sm:$0xff]
    %v40 = vld [vmem:[%s1 + $0xb8] sm:$0xff]
    %v41 = vld [vmem:[%s1 + $0xc0] sm:$0xff]
    %v42 = vld [vmem:[%s1 + $0xc8] sm:$0xff]
    %v43 = vld [vmem:[%s1 + $0xd0] sm:$0xff]
    %v44 = vld [vmem:[%s1 + $0xd8] sm:$0xff]
    %v45 = vld [vmem:[%s1 + $0xe0] sm:$0xff]
    %v46 = vld [vmem:[%s1 + $0xe8] sm:$0xff]
    %v47 = vld [vmem:[%s1 + $0xf0] sm:$0xff]
    %v48 = vld [vmem:[%s1 + $0xf8] sm:$0xff]
    %v49 = vld [vmem:[%s2] sm:$0x1]
    %v51 = vlaneseq
    %v52 = vshrl.u32 %v51, 7
    %v53 = vsub.s32 0, %v52
    %v54 = vrot.slane %v49, %v53
    %56 = vmatprep.subr.mxu0 0.0
    %57 = vmatpush1.msra.mxu0 %v32
    %58 = vmatprep.subr.mxu0 0.0
    %59 = vmatpush1.msra.mxu0 %v31
    %60 = vmatprep.subr.mxu0 0.0
    %61 = vmatpush1.msra.mxu0 %v30
    %62 = vmatprep.subr.mxu0 0.0
    %63 = vmatpush1.msra.mxu0 %v29
    %64 = vmatprep.subr.mxu0 0.0
    %65 = vmatpush1.msra.mxu0 %v28
    %66 = vmatprep.subr.mxu0 0.0
    %67 = vmatpush1.msra.mxu0 %v27
    %68 = vmatprep.subr.mxu0 0.0
    %69 = vmatpush1.msra.mxu0 %v26
    %70 = vmatprep.subr.mxu0 0.0
    %71 = vmatpush1.msra.mxu0 %v25
    %72 = vmatprep.subr.mxu0 0.0
    %73 = vmatpush1.msra.mxu0 %v24
    %74 = vmatprep.subr.mxu0 0.0
    %75 = vmatpush1.msra.mxu0 %v23
    %76 = vmatprep.subr.mxu0 0.0
    %77 = vmatpush1.msra.mxu0 %v22
    %78 = vmatprep.subr.mxu0 0.0
    %79 = vmatpush1.msra.mxu0 %v21
    %80 = vmatprep.subr.mxu0 0.0
    %81 = vmatpush1.msra.mxu0 %v20
    %82 = vmatprep.subr.mxu0 0.0
    %83 = vmatpush1.msra.mxu0 %v19
    %84 = vmatprep.subr.mxu0 0.0
    %85 = vmatpush1.msra.mxu0 %v18
    %86 = vmatprep.subr.mxu0 0.0
    %87 = vmatpush1.msra.mxu0 %v17
    %88 = vmatprep.subr.mxu0 0.0
    %89 = vmatpush2.msra.mxu0 %v48
    %90 = vmatprep.subr.mxu0 0.0
    %91 = vmatpush2.msra.mxu0 %v47
    %92 = vmatprep.subr.mxu0 0.0
    %93 = vmatpush2.msra.mxu0 %v46
    %94 = vmatprep.subr.mxu0 0.0
    %95 = vmatpush2.msra.mxu0 %v45
    %96 = vmatprep.subr.mxu0 0.0
    %97 = vmatpush2.msra.mxu0 %v44
    %98 = vmatprep.subr.mxu0 0.0
    %99 = vmatpush2.msra.mxu0 %v43
    %100 = vmatprep.subr.mxu0 0.0
    %101 = vmatpush2.msra.mxu0 %v42
    %102 = vmatprep.subr.mxu0 0.0
    %103 = vmatpush2.msra.mxu0 %v41
    %104 = vmatprep.subr.mxu0 0.0
    %105 = vmatpush2.msra.mxu0 %v40
    %106 = vmatprep.subr.mxu0 0.0
    %107 = vmatpush2.msra.mxu0 %v39
    %108 = vmatprep.subr.mxu0 0.0
    %109 = vmatpush2.msra.mxu0 %v38
    %110 = vmatprep.subr.mxu0 0.0
    %111 = vmatpush2.msra.mxu0 %v37
    %112 = vmatprep.subr.mxu0 0.0
    %113 = vmatpush2.msra.mxu0 %v36
    %114 = vmatprep.subr.mxu0 0.0
    %115 = vmatpush2.msra.mxu0 %v35
    %116 = vmatprep.subr.mxu0 0.0
    %117 = vmatpush2.msra.mxu0 %v34
    %118 = vmatprep.subr.mxu0 0.0
    %119 = vmatpush2.msra.mxu0 %v33
    %120 = vmatprep.mubr.f32.mxu0 %v16
    %121 = vmatmul.mubr.f32.gmra.mxu0 %v15
    %v122 = vpop.f32.mrf.mxu0
    %v123 = vadd.f32 %v54, %v122
    %v124 = vpop.f32.mrf.mxu0
    %125 = vdwg.mxu0
    %vm126 = vcmask 64512
    %127 = vst.msk [vmem:[#allocation2] sm:$0xff] %vm126, %v123
    // Predicated region
    $region14: #{encoder_forward.13} parent=1 // pred_check
      _
    $region15: #{encoder_forward.13} parent=1 // pred_check_branch
      %129 = sbr.rel (0) target = $region17
    $region16: #{encoder_forward.13} parent=1 // pred_region
      %s131 = ssub.s32 128, 128
      %132 = vsyncadd [#allocation3], %s131
      %s134 = sshll.u32 [#allocation2], 4
      %s135 = int_to_ptr.vmem [resolvable:$true] %s134
      %137 = dma.vmem_to_hbm [thread:$0]  %s135, 128, %s3, [#allocation3]
    $region17: #{encoder_forward.13} parent=1 // pred_fallthru
      _
    // Predicated region
    $region18: #{encoder_forward.13} parent=1 // pred_check
      _
    $region19: #{encoder_forward.13} parent=1 // pred_check_branch
      %139 = sbr.rel (0) target = $region21
    $region20: #{encoder_forward.13} parent=1 // pred_region
      %140 = dma.done [#allocation3], 128
    $region21: #{encoder_forward.13} parent=1 // pred_fallthru
      _
    %141 = vsyncpa [#allocation3], 1

</llo_original>
